<compile_context>
chip_gen: v6e
topology: v6e:2x2x1
jax: 0.10.0
libtpu: 0.0.40
codegen_flags: <defaults>
</compile_context>

<pallas_src>
import functools

import jax
import jax.numpy as jnp
from jax.experimental import pallas as pl
from jax.experimental.pallas import tpu as pltpu

SELU_ALPHA = 1.6732632423543772
SELU_SCALE = 1.0507009873554805


def _round_up(n, m):
    return ((n + m - 1) // m) * m


# ---------------------------------------------------------------------------
# Best-effort hardware probes (never fatal).
# ---------------------------------------------------------------------------
@functools.lru_cache(maxsize=None)
def _num_tensorcores():
    """TensorCores per device (v7x: 2, v5e/v6e: 1). Defaults to 1 if unknown."""
    try:
        info = pltpu.get_tpu_info()
        for name in ("num_cores", "core_count", "num_tensorcores",
                     "tensorcore_count", "cores_per_chip",
                     "tensor_cores_per_chip"):
            v = getattr(info, name, None)
            if isinstance(v, int) and v > 0:
                return v
    except Exception:
        pass
    try:
        v = getattr(jax.devices()[0], "num_cores", None)
        if isinstance(v, int) and v > 0:
            return v
    except Exception:
        pass
    return 1


@functools.lru_cache(maxsize=None)
def _vmem_cap_bytes():
    """~90% of physical VMEM; fallback stays under v5e/v6e's 128 MiB."""
    try:
        cap = int(pltpu.get_tpu_info().vmem_capacity_bytes)
        if cap > 0:
            return int(cap * 0.9)
    except Exception:
        pass
    return 112 << 20


@functools.lru_cache(maxsize=None)
def _has_bf16_vector_units():
    """v6e/v7x have bf16 VPU/EUP; v5e does not (best-effort device_kind sniff)."""
    try:
        kind = jax.devices()[0].device_kind.lower()
        if "v5 lite" in kind or "v5lite" in kind or "v5e" in kind:
            return False
    except Exception:
        pass
    return True


def _auto_act_dtype(matmul_dtype):
    if (jnp.dtype(matmul_dtype) == jnp.dtype(jnp.bfloat16)
            and _has_bf16_vector_units()):
        return jnp.bfloat16
    return jnp.float32


# ---------------------------------------------------------------------------
# Kernel.
# ---------------------------------------------------------------------------
def _selu_unscaled(x):
    # SELU without the outer `scale` factor; the scale is folded into the
    # *next* layer's weights at prep time.  exp(x)-1 (not expm1) keeps the
    # lowering on the plain EUP exp path.
    return jnp.where(x > 0, x, SELU_ALPHA * (jnp.exp(x) - 1.0))


def _odefunc_kernel(x_ref,
                    w1_ref, b1_ref,
                    w2_ref, b2_ref,
                    w3_ref, b3_ref,
                    w4_ref, b4_ref,
                    o_ref, *, act_dtype):
    mdt = w1_ref.dtype            # matmul operand dtype; accumulation is f32.
    x = x_ref[...].astype(mdt)    # cast in-kernel: no wrapper-side HBM round trip.

    h = jnp.dot(x, w1_ref[...], preferred_element_type=jnp.float32)
    a = _selu_unscaled((h + b1_ref[...]).astype(act_dtype))

    h = jnp.dot(a.astype(mdt), w2_ref[...], preferred_element_type=jnp.float32)
    a = _selu_unscaled((h + b2_ref[...]).astype(act_dtype))

    h = jnp.dot(a.astype(mdt), w3_ref[...], preferred_element_type=jnp.float32)
    a = _selu_unscaled((h + b3_ref[...]).astype(act_dtype))

    h = jnp.dot(a.astype(mdt), w4_ref[...], preferred_element_type=jnp.float32)
    o_ref[...] = (h + b4_ref[...]).astype(o_ref.dtype)


# ---------------------------------------------------------------------------
# Parameter prep (one-time): pad to lane-dense, fold SELU scale.
# ---------------------------------------------------------------------------
def prepare_params(params, matmul_dtype=jnp.float32):
    """Pad params to multiples of 128 and fold SELU scale into W2/W3/W4.

    Returns ((padded arrays...), d_in).  Padded weight rows/cols and padded
    bias entries are zero so padded lanes never contaminate valid outputs.
    Biases stay f32 (added onto the f32 accumulator)."""
    (w1, b1), (w2, b2), (w3, b3), (w4, b4) = params
    d_in, hidden = w1.shape
    dp = _round_up(d_in, 128)
    hp = _round_up(hidden, 128)

    def pad_w(w, rows, cols, scale=1.0):
        w = (w * scale).astype(jnp.float32)
        w = jnp.pad(w, ((0, rows - w.shape[0]), (0, cols - w.shape[1])))
        return w.astype(matmul_dtype)

    def pad_b(b, cols):
        b = jnp.reshape(b, (1, -1)).astype(jnp.float32)
        return jnp.pad(b, ((0, 0), (0, cols - b.shape[1])))

    padded = (
        pad_w(w1, dp, hp),              pad_b(b1, hp),
        pad_w(w2, hp, hp, SELU_SCALE),  pad_b(b2, hp),   # absorbs SELU scale of layer 1
        pad_w(w3, hp, hp, SELU_SCALE),  pad_b(b3, hp),   # absorbs SELU scale of layer 2
        pad_w(w4, hp, dp, SELU_SCALE),  pad_b(b4, dp),   # absorbs SELU scale of layer 3
    )
    return padded, d_in


# ---------------------------------------------------------------------------
# pallas_call core.
# ---------------------------------------------------------------------------
@functools.partial(
    jax.jit, static_argnames=("tile", "act_dtype", "single_buffer_weights"))
def _odefunc_core(xp, pparams, *, tile, act_dtype, single_buffer_weights):
    b_pad, dp = xp.shape
    hp = pparams[0].shape[1]
    grid = (b_pad // tile,)

    full = lambda i: (0, 0)

    def wspec(shape):
        # Constant index_map -> DMA'd once, resident in VMEM.  Single-buffer
        # them so the (never-used) second pipeline buffer doesn't double the
        # resident weight footprint.
        if single_buffer_weights:
            return pl.BlockSpec(shape, full, pipeline_mode=pl.Buffered(1))
        return pl.BlockSpec(shape, full)

    in_specs = [
        pl.BlockSpec((tile, dp), lambda i: (i, 0)),            # x tile
        wspec((dp, hp)), wspec((1, hp)),                       # layer 1
        wspec((hp, hp)), wspec((1, hp)),                       # layer 2
        wspec((hp, hp)), wspec((1, hp)),                       # layer 3
        wspec((hp, dp)), wspec((1, dp)),                       # layer 4
    ]
    out_specs = pl.BlockSpec((tile, dp), lambda i: (i, 0))

    # Explicit VMEM budget: resident weights * buffer_count + double-buffered
    # x/out tiles + f32 activation headroom.  Never below the 32 MiB scoped
    # default; capped just under physical VMEM.
    wbuf = 1 if single_buffer_weights else 2
    param_bytes = sum(int(p.size) * jnp.dtype(p.dtype).itemsize for p in pparams)
    io_itemsize = jnp.dtype(xp.dtype).itemsize
    est = (wbuf * param_bytes
           + 2 * tile * dp * io_itemsize            # x (double-buffered)
           + 2 * tile * dp * io_itemsize            # out (double-buffered)
           + 4 * tile * hp * 4                      # activation temporaries
           + (2 << 20))                             # headroom
    vmem_limit = int(min(max(est, 32 << 20), _vmem_cap_bytes()))

    flops = 2 * b_pad * (dp * hp + 2 * hp * hp + hp * dp)
    transcendentals = 3 * b_pad * hp
    bytes_accessed = 2 * b_pad * dp * io_itemsize + param_bytes

    kernel = functools.partial(_odefunc_kernel, act_dtype=act_dtype)

    return pl.pallas_call(
        kernel,
        out_shape=jax.ShapeDtypeStruct((b_pad, dp), xp.dtype),
        grid_spec=pltpu.PrefetchScalarGridSpec(
            num_scalar_prefetch=0,
            grid=grid,
            in_specs=in_specs,
            out_specs=out_specs,
        ),
        compiler_params=pltpu.CompilerParams(
            dimension_semantics=("parallel",),
            vmem_limit_bytes=vmem_limit),
        cost_estimate=pl.CostEstimate(
            flops=flops,
            transcendentals=transcendentals,
            bytes_accessed=bytes_accessed),
    )(xp, *pparams)


_SINGLE_BUFFER_OK = [True]   # flips to False if pl.Buffered(1) is rejected


def _run_core(xp, pparams, tile, act_dtype):
    if _SINGLE_BUFFER_OK[0]:
        try:
            return _odefunc_core(xp, pparams, tile=tile, act_dtype=act_dtype,
                                 single_buffer_weights=True)
        except Exception:
            # This jax/Mosaic build rejects buffer_count=1 on resident blocks;
            # fall back (once) to default double-buffered weights.
            _SINGLE_BUFFER_OK[0] = False
    return _odefunc_core(xp, pparams, tile=tile, act_dtype=act_dtype,
                         single_buffer_weights=False)


def _pick_tile(b_pad, tile_b, num_cores):
    """Largest multiple-of-8 tile <= tile_b dividing b_pad; on multi-TC chips
    prefer >= num_cores grid steps when the batch allows it."""
    target = min(int(tile_b), b_pad)
    if num_cores > 1 and b_pad >= 8 * num_cores:
        per_core = _round_up(-(-b_pad // num_cores), 8)
        target = min(target, per_core)
    tile = max((target // 8) * 8, 8)
    while b_pad % tile:
        tile -= 8
    return tile


# ---------------------------------------------------------------------------
# Public entry points.
# ---------------------------------------------------------------------------
def pad_state(x, prepared):
    """One-time: lift (B, d_in) solver state into the padded (B_pad, D_pad)
    layout used by odefunc_forward_padded.  Padded lanes stay zero."""
    pparams, _ = prepared
    dp = pparams[0].shape[0]
    b, d = x.shape
    return jnp.pad(x, ((0, _round_up(b, 8) - b), (0, dp - d)))


def unpad_state(x_padded, prepared, batch):
    """One-time: back to the original (batch, d_in) layout."""
    _, d_in = prepared
    return x_padded[:batch, :d_in]


def odefunc_forward_padded(t, x_padded, prepared, *, tile_b=1024, act_dtype=None):
    """Hot-loop entry for ODE solvers: input/output stay in the padded
    (B_pad, D_pad) layout -- no per-step pad/cast/slice. `t` is unused."""
    del t
    pparams, _ = prepared
    dp = pparams[0].shape[0]
    b_pad, dpx = x_padded.shape
    assert dpx == dp and b_pad % 8 == 0, "use pad_state() to build the state"
    if act_dtype is None:
        act_dtype = _auto_act_dtype(pparams[0].dtype)
    tile = _pick_tile(b_pad, tile_b, _num_tensorcores())
    return _run_core(x_padded, pparams, tile, act_dtype)


def odefunc_forward(t, x, prepared, *, tile_b=1024, act_dtype=None):
    """Convenience entry: ODEFunc.forward(t, x) on an un-padded x. `t` unused."""
    del t
    pparams, d_in = prepared
    dp = pparams[0].shape[0]
    b, d = x.shape
    b_pad = _round_up(b, 8)
    if act_dtype is None:
        act_dtype = _auto_act_dtype(pparams[0].dtype)
    tile = _pick_tile(b_pad, tile_b, _num_tensorcores())
    xp = x if (b_pad == b and dp == d) else jnp.pad(x, ((0, b_pad - b), (0, dp - d)))
    out = _run_core(xp, pparams, tile, act_dtype)
    if out.shape == (b, d_in):
        return out
    return out[:b, :d_in]


# ---------------------------------------------------------------------------
# Init + pure-JAX reference.
# ---------------------------------------------------------------------------
def init_params(key, input_dim, hidden_dim, dtype=jnp.float32):
    """Matches PyTorch init: weight ~ N(0, 0.001), bias = 0.5.
    Weights stored [in_features, out_features], so forward is y = x @ W + b."""
    dims = [(input_dim, hidden_dim),
            (hidden_dim, hidden_dim),
            (hidden_dim, hidden_dim),
            (hidden_dim, input_dim)]
    params = []
    for (fan_in, fan_out) in dims:
        key, wk = jax.random.split(key)
        w = 0.001 * jax.random.normal(wk, (fan_in, fan_out), dtype=dtype)
        b = jnp.full((1, fan_out), 0.5, dtype=dtype)
        params.append((w, b))
    return tuple(params)


def odefunc_reference(t, x, params):
    """Pure-JAX reference (unpadded, unfolded) for correctness checking."""
    del t
    (w1, b1), (w2, b2), (w3, b3), (w4, b4) = params

    def selu(v):
        return SELU_SCALE * jnp.where(v > 0, v, SELU_ALPHA * (jnp.exp(v) - 1.0))

    h = selu(x @ w1 + b1)
    h = selu(h @ w2 + b2)
    h = selu(h @ w3 + b3)
    return h @ w4 + b4


if __name__ == "__main__":
    key = jax.random.PRNGKey(0)
    key, xk = jax.random.split(key)

    B, D_IN, H = 16, 16, 32           # small test shapes
    x = jax.random.normal(xk, (B, D_IN), dtype=jnp.float32)
    t = jnp.float32(0.0)              # unused, as in the PyTorch module

    params = init_params(key, D_IN, H)
    ref = odefunc_reference(t, x, params)

    # f32 path: exact (padding/folding is algebraically exact).
    prepared_f32 = prepare_params(params, matmul_dtype=jnp.float32)
    out = jax.block_until_ready(odefunc_forward(t, x, prepared_f32))
    assert out.shape == (B, D_IN) and out.dtype == jnp.float32
    assert jnp.allclose(out, ref, atol=1e-5, rtol=1e-5), "f32 mismatch vs reference"

    # Padded-layout hot path (no wrapper pad/cast/slice per step), f32.
    xp = pad_state(x, prepared_f32)
    dxp = jax.block_until_ready(odefunc_forward_padded(t, xp, prepared_f32))
    assert dxp.shape == xp.shape
    assert jnp.allclose(unpad_state(dxp, prepared_f32, B), ref,
                        atol=1e-5, rtol=1e-5), "padded-path mismatch vs reference"

    # bf16 matmul operands, f32 accumulation; bf16 SELU on v6e/v7x.
    prepared_bf16 = prepare_params(params, matmul_dtype=jnp.bfloat16)
    out_bf16 = jax.block_until_ready(odefunc_forward(t, x, prepared_bf16))
    assert out_bf16.shape == (B, D_IN)
    assert jnp.allclose(out_bf16, ref, atol=5e-2, rtol=5e-2), "bf16 mismatch vs reference"

    print("KERNEL_OK")
</pallas_src>

<mosaic_0001>
module attributes {stable_mosaic.version = 11 : i64} {
  func.func @_odefunc_kernel(%arg0: i32, %arg1: memref<16x128xf32, #tpu.memory_space<vmem>>, %arg2: memref<128x128xf32, #tpu.memory_space<vmem>>, %arg3: memref<1x128xf32, #tpu.memory_space<vmem>>, %arg4: memref<128x128xf32, #tpu.memory_space<vmem>>, %arg5: memref<1x128xf32, #tpu.memory_space<vmem>>, %arg6: memref<128x128xf32, #tpu.memory_space<vmem>>, %arg7: memref<1x128xf32, #tpu.memory_space<vmem>>, %arg8: memref<128x128xf32, #tpu.memory_space<vmem>>, %arg9: memref<1x128xf32, #tpu.memory_space<vmem>>, %arg10: memref<16x128xf32, #tpu.memory_space<vmem>>) attributes {dimension_semantics = [#tpu.dimension_semantics<parallel>], iteration_bounds = array<i64: 1>, scalar_prefetch = 0 : i64, scratch_operands = 0 : i64, tpu.core_type = #tpu.core_type<tc>, window_params = [{transform_indices = @transform_0, window_bounds = array<i64: 16, 128>}, {pipeline_mode = #tpu.pipeline_mode<synchronous>, transform_indices = @transform_1, window_bounds = array<i64: 128, 128>}, {pipeline_mode = #tpu.pipeline_mode<synchronous>, transform_indices = @transform_2, window_bounds = array<i64: 1, 128>}, {pipeline_mode = #tpu.pipeline_mode<synchronous>, transform_indices = @transform_3, window_bounds = array<i64: 128, 128>}, {pipeline_mode = #tpu.pipeline_mode<synchronous>, transform_indices = @transform_4, window_bounds = array<i64: 1, 128>}, {pipeline_mode = #tpu.pipeline_mode<synchronous>, transform_indices = @transform_5, window_bounds = array<i64: 128, 128>}, {pipeline_mode = #tpu.pipeline_mode<synchronous>, transform_indices = @transform_6, window_bounds = array<i64: 1, 128>}, {pipeline_mode = #tpu.pipeline_mode<synchronous>, transform_indices = @transform_7, window_bounds = array<i64: 128, 128>}, {pipeline_mode = #tpu.pipeline_mode<synchronous>, transform_indices = @transform_8, window_bounds = array<i64: 1, 128>}, {transform_indices = @transform_9, window_bounds = array<i64: 16, 128>}]} {
    %c0 = arith.constant 0 : index
    %c0_0 = arith.constant 0 : index
    %0 = vector.load %arg1[%c0, %c0_0] : memref<16x128xf32, #tpu.memory_space<vmem>>, vector<16x128xf32>
    %c0_1 = arith.constant 0 : index
    %c0_2 = arith.constant 0 : index
    %1 = vector.load %arg2[%c0_1, %c0_2] : memref<128x128xf32, #tpu.memory_space<vmem>>, vector<128x128xf32>
    %cst = arith.constant dense<0.000000e+00> : vector<16x128xf32>
    %2 = tpu.matmul %0, %1, %cst {dimension_numbers = #tpu.dot_dimension_numbers<[1], [0], [0], [1], [0, 0, 1, 1], [], []>} : vector<16x128xf32>, vector<128x128xf32>, vector<16x128xf32> -> vector<16x128xf32>
    %c0_3 = arith.constant 0 : index
    %c0_4 = arith.constant 0 : index
    %3 = vector.load %arg3[%c0_3, %c0_4] : memref<1x128xf32, #tpu.memory_space<vmem>>, vector<1x128xf32>
    %4 = vector.broadcast %3 : vector<1x128xf32> to vector<16x128xf32>
    %5 = arith.addf %2, %4 : vector<16x128xf32>
    %cst_5 = arith.constant 0.000000e+00 : f32
    %6 = vector.broadcast %cst_5 : f32 to vector<16x128xf32>
    %7 = arith.cmpf ogt, %5, %6 : vector<16x128xf32>
    %8 = math.exp %5 : vector<16x128xf32>
    %cst_6 = arith.constant 1.000000e+00 : f32
    %9 = vector.broadcast %cst_6 : f32 to vector<16x128xf32>
    %10 = arith.subf %8, %9 : vector<16x128xf32>
    %cst_7 = arith.constant 1.67326319 : f32
    %11 = vector.broadcast %cst_7 : f32 to vector<16x128xf32>
    %12 = arith.mulf %11, %10 : vector<16x128xf32>
    %13 = arith.select %7, %5, %12 : vector<16x128xi1>, vector<16x128xf32>
    %c0_8 = arith.constant 0 : index
    %c0_9 = arith.constant 0 : index
    %14 = vector.load %arg4[%c0_8, %c0_9] : memref<128x128xf32, #tpu.memory_space<vmem>>, vector<128x128xf32>
    %cst_10 = arith.constant dense<0.000000e+00> : vector<16x128xf32>
    %15 = tpu.matmul %13, %14, %cst_10 {dimension_numbers = #tpu.dot_dimension_numbers<[1], [0], [0], [1], [0, 0, 1, 1], [], []>} : vector<16x128xf32>, vector<128x128xf32>, vector<16x128xf32> -> vector<16x128xf32>
    %c0_11 = arith.constant 0 : index
    %c0_12 = arith.constant 0 : index
    %16 = vector.load %arg5[%c0_11, %c0_12] : memref<1x128xf32, #tpu.memory_space<vmem>>, vector<1x128xf32>
    %17 = vector.broadcast %16 : vector<1x128xf32> to vector<16x128xf32>
    %18 = arith.addf %15, %17 : vector<16x128xf32>
    %cst_13 = arith.constant 0.000000e+00 : f32
    %19 = vector.broadcast %cst_13 : f32 to vector<16x128xf32>
    %20 = arith.cmpf ogt, %18, %19 : vector<16x128xf32>
    %21 = math.exp %18 : vector<16x128xf32>
    %cst_14 = arith.constant 1.000000e+00 : f32
    %22 = vector.broadcast %cst_14 : f32 to vector<16x128xf32>
    %23 = arith.subf %21, %22 : vector<16x128xf32>
    %cst_15 = arith.constant 1.67326319 : f32
    %24 = vector.broadcast %cst_15 : f32 to vector<16x128xf32>
    %25 = arith.mulf %24, %23 : vector<16x128xf32>
    %26 = arith.select %20, %18, %25 : vector<16x128xi1>, vector<16x128xf32>
    %c0_16 = arith.constant 0 : index
    %c0_17 = arith.constant 0 : index
    %27 = vector.load %arg6[%c0_16, %c0_17] : memref<128x128xf32, #tpu.memory_space<vmem>>, vector<128x128xf32>
    %cst_18 = arith.constant dense<0.000000e+00> : vector<16x128xf32>
    %28 = tpu.matmul %26, %27, %cst_18 {dimension_numbers = #tpu.dot_dimension_numbers<[1], [0], [0], [1], [0, 0, 1, 1], [], []>} : vector<16x128xf32>, vector<128x128xf32>, vector<16x128xf32> -> vector<16x128xf32>
    %c0_19 = arith.constant 0 : index
    %c0_20 = arith.constant 0 : index
    %29 = vector.load %arg7[%c0_19, %c0_20] : memref<1x128xf32, #tpu.memory_space<vmem>>, vector<1x128xf32>
    %30 = vector.broadcast %29 : vector<1x128xf32> to vector<16x128xf32>
    %31 = arith.addf %28, %30 : vector<16x128xf32>
    %cst_21 = arith.constant 0.000000e+00 : f32
    %32 = vector.broadcast %cst_21 : f32 to vector<16x128xf32>
    %33 = arith.cmpf ogt, %31, %32 : vector<16x128xf32>
    %34 = math.exp %31 : vector<16x128xf32>
    %cst_22 = arith.constant 1.000000e+00 : f32
    %35 = vector.broadcast %cst_22 : f32 to vector<16x128xf32>
    %36 = arith.subf %34, %35 : vector<16x128xf32>
    %cst_23 = arith.constant 1.67326319 : f32
    %37 = vector.broadcast %cst_23 : f32 to vector<16x128xf32>
    %38 = arith.mulf %37, %36 : vector<16x128xf32>
    %39 = arith.select %33, %31, %38 : vector<16x128xi1>, vector<16x128xf32>
    %c0_24 = arith.constant 0 : index
    %c0_25 = arith.constant 0 : index
    %40 = vector.load %arg8[%c0_24, %c0_25] : memref<128x128xf32, #tpu.memory_space<vmem>>, vector<128x128xf32>
    %cst_26 = arith.constant dense<0.000000e+00> : vector<16x128xf32>
    %41 = tpu.matmul %39, %40, %cst_26 {dimension_numbers = #tpu.dot_dimension_numbers<[1], [0], [0], [1], [0, 0, 1, 1], [], []>} : vector<16x128xf32>, vector<128x128xf32>, vector<16x128xf32> -> vector<16x128xf32>
    %c0_27 = arith.constant 0 : index
    %c0_28 = arith.constant 0 : index
    %42 = vector.load %arg9[%c0_27, %c0_28] : memref<1x128xf32, #tpu.memory_space<vmem>>, vector<1x128xf32>
    %43 = vector.broadcast %42 : vector<1x128xf32> to vector<16x128xf32>
    %44 = arith.addf %41, %43 : vector<16x128xf32>
    %c0_29 = arith.constant 0 : index
    %c0_30 = arith.constant 0 : index
    %45 = vector.load %arg10[%c0_29, %c0_30] : memref<16x128xf32, #tpu.memory_space<vmem>>, vector<16x128xf32>
    tpu.vector_store %arg10[%c0_29, %c0_30], %44 {strides = array<i32>} : memref<16x128xf32, #tpu.memory_space<vmem>>, vector<16x128xf32>,
    return
  }
  func.func @transform_0(%arg0: i32) -> (i32, i32) {
    %c0_i32 = arith.constant 0 : i32
    %c0_i32_0 = arith.constant 0 : i32
    return %arg0, %c0_i32 : i32, i32
  }
  func.func @transform_1(%arg0: i32) -> (i32, i32) {
    %c0_i32 = arith.constant 0 : i32
    %c0_i32_0 = arith.constant 0 : i32
    %c0_i32_1 = arith.constant 0 : i32
    return %c0_i32, %c0_i32_0 : i32, i32
  }
  func.func @transform_2(%arg0: i32) -> (i32, i32) {
    %c0_i32 = arith.constant 0 : i32
    %c0_i32_0 = arith.constant 0 : i32
    %c0_i32_1 = arith.constant 0 : i32
    return %c0_i32, %c0_i32_0 : i32, i32
  }
  func.func @transform_3(%arg0: i32) -> (i32, i32) {
    %c0_i32 = arith.constant 0 : i32
    %c0_i32_0 = arith.constant 0 : i32
    %c0_i32_1 = arith.constant 0 : i32
    return %c0_i32, %c0_i32_0 : i32, i32
  }
  func.func @transform_4(%arg0: i32) -> (i32, i32) {
    %c0_i32 = arith.constant 0 : i32
    %c0_i32_0 = arith.constant 0 : i32
    %c0_i32_1 = arith.constant 0 : i32
    return %c0_i32, %c0_i32_0 : i32, i32
  }
  func.func @transform_5(%arg0: i32) -> (i32, i32) {
    %c0_i32 = arith.constant 0 : i32
    %c0_i32_0 = arith.constant 0 : i32
    %c0_i32_1 = arith.constant 0 : i32
    return %c0_i32, %c0_i32_0 : i32, i32
  }
  func.func @transform_6(%arg0: i32) -> (i32, i32) {
    %c0_i32 = arith.constant 0 : i32
    %c0_i32_0 = arith.constant 0 : i32
    %c0_i32_1 = arith.constant 0 : i32
    return %c0_i32, %c0_i32_0 : i32, i32
  }
  func.func @transform_7(%arg0: i32) -> (i32, i32) {
    %c0_i32 = arith.constant 0 : i32
    %c0_i32_0 = arith.constant 0 : i32
    %c0_i32_1 = arith.constant 0 : i32
    return %c0_i32, %c0_i32_0 : i32, i32
  }
  func.func @transform_8(%arg0: i32) -> (i32, i32) {
    %c0_i32 = arith.constant 0 : i32
    %c0_i32_0 = arith.constant 0 : i32
    %c0_i32_1 = arith.constant 0 : i32
    return %c0_i32, %c0_i32_0 : i32, i32
  }
  func.func @transform_9(%arg0: i32) -> (i32, i32) {
    %c0_i32 = arith.constant 0 : i32
    %c0_i32_0 = arith.constant 0 : i32
    return %arg0, %c0_i32 : i32, i32
  }
}

module attributes {stable_mosaic.version = 11 : i64} {
  func.func @_odefunc_kernel(%arg0: i32, %arg1: memref<16x128xf32, #tpu.memory_space<vmem>>, %arg2: memref<128x128xf32, #tpu.memory_space<vmem>>, %arg3: memref<1x128xf32, #tpu.memory_space<vmem>>, %arg4: memref<128x128xf32, #tpu.memory_space<vmem>>, %arg5: memref<1x128xf32, #tpu.memory_space<vmem>>, %arg6: memref<128x128xf32, #tpu.memory_space<vmem>>, %arg7: memref<1x128xf32, #tpu.memory_space<vmem>>, %arg8: memref<128x128xf32, #tpu.memory_space<vmem>>, %arg9: memref<1x128xf32, #tpu.memory_space<vmem>>, %arg10: memref<16x128xf32, #tpu.memory_space<vmem>>) attributes {dimension_semantics = [#tpu.dimension_semantics<parallel>], iteration_bounds = array<i64: 1>, scalar_prefetch = 0 : i64, scratch_operands = 0 : i64, tpu.core_type = #tpu.core_type<tc>, window_params = [{transform_indices = @transform_0, window_bounds = array<i64: 16, 128>}, {pipeline_mode = #tpu.pipeline_mode<synchronous>, transform_indices = @transform_1, window_bounds = array<i64: 128, 128>}, {pipeline_mode = #tpu.pipeline_mode<synchronous>, transform_indices = @transform_2, window_bounds = array<i64: 1, 128>}, {pipeline_mode = #tpu.pipeline_mode<synchronous>, transform_indices = @transform_3, window_bounds = array<i64: 128, 128>}, {pipeline_mode = #tpu.pipeline_mode<synchronous>, transform_indices = @transform_4, window_bounds = array<i64: 1, 128>}, {pipeline_mode = #tpu.pipeline_mode<synchronous>, transform_indices = @transform_5, window_bounds = array<i64: 128, 128>}, {pipeline_mode = #tpu.pipeline_mode<synchronous>, transform_indices = @transform_6, window_bounds = array<i64: 1, 128>}, {pipeline_mode = #tpu.pipeline_mode<synchronous>, transform_indices = @transform_7, window_bounds = array<i64: 128, 128>}, {pipeline_mode = #tpu.pipeline_mode<synchronous>, transform_indices = @transform_8, window_bounds = array<i64: 1, 128>}, {transform_indices = @transform_9, window_bounds = array<i64: 16, 128>}]} {
    %c0 = arith.constant 0 : index
    %c0_0 = arith.constant 0 : index
    %0 = vector.load %arg1[%c0, %c0_0] : memref<16x128xf32, #tpu.memory_space<vmem>>, vector<16x128xf32>
    %c0_1 = arith.constant 0 : index
    %c0_2 = arith.constant 0 : index
    %1 = vector.load %arg2[%c0_1, %c0_2] : memref<128x128xf32, #tpu.memory_space<vmem>>, vector<128x128xf32>
    %cst = arith.constant dense<0.000000e+00> : vector<16x128xf32>
    %2 = tpu.matmul %0, %1, %cst {dimension_numbers = #tpu.dot_dimension_numbers<[1], [0], [0], [1], [0, 0, 1, 1], [], []>} : vector<16x128xf32>, vector<128x128xf32>, vector<16x128xf32> -> vector<16x128xf32>
    %c0_3 = arith.constant 0 : index
    %c0_4 = arith.constant 0 : index
    %3 = vector.load %arg3[%c0_3, %c0_4] : memref<1x128xf32, #tpu.memory_space<vmem>>, vector<1x128xf32>
    %4 = vector.broadcast %3 : vector<1x128xf32> to vector<16x128xf32>
    %5 = arith.addf %2, %4 : vector<16x128xf32>
    %cst_5 = arith.constant 0.000000e+00 : f32
    %6 = vector.broadcast %cst_5 : f32 to vector<16x128xf32>
    %7 = arith.cmpf ogt, %5, %6 : vector<16x128xf32>
    %8 = math.exp %5 : vector<16x128xf32>
    %cst_6 = arith.constant 1.000000e+00 : f32
    %9 = vector.broadcast %cst_6 : f32 to vector<16x128xf32>
    %10 = arith.subf %8, %9 : vector<16x128xf32>
    %cst_7 = arith.constant 1.67326319 : f32
    %11 = vector.broadcast %cst_7 : f32 to vector<16x128xf32>
    %12 = arith.mulf %11, %10 : vector<16x128xf32>
    %13 = arith.select %7, %5, %12 : vector<16x128xi1>, vector<16x128xf32>
    %c0_8 = arith.constant 0 : index
    %c0_9 = arith.constant 0 : index
    %14 = vector.load %arg4[%c0_8, %c0_9] : memref<128x128xf32, #tpu.memory_space<vmem>>, vector<128x128xf32>
    %cst_10 = arith.constant dense<0.000000e+00> : vector<16x128xf32>
    %15 = tpu.matmul %13, %14, %cst_10 {dimension_numbers = #tpu.dot_dimension_numbers<[1], [0], [0], [1], [0, 0, 1, 1], [], []>} : vector<16x128xf32>, vector<128x128xf32>, vector<16x128xf32> -> vector<16x128xf32>
    %c0_11 = arith.constant 0 : index
    %c0_12 = arith.constant 0 : index
    %16 = vector.load %arg5[%c0_11, %c0_12] : memref<1x128xf32, #tpu.memory_space<vmem>>, vector<1x128xf32>
    %17 = vector.broadcast %16 : vector<1x128xf32> to vector<16x128xf32>
    %18 = arith.addf %15, %17 : vector<16x128xf32>
    %cst_13 = arith.constant 0.000000e+00 : f32
    %19 = vector.broadcast %cst_13 : f32 to vector<16x128xf32>
    %20 = arith.cmpf ogt, %18, %19 : vector<16x128xf32>
    %21 = math.exp %18 : vector<16x128xf32>
    %cst_14 = arith.constant 1.000000e+00 : f32
    %22 = vector.broadcast %cst_14 : f32 to vector<16x128xf32>
    %23 = arith.subf %21, %22 : vector<16x128xf32>
    %cst_15 = arith.constant 1.67326319 : f32
    %24 = vector.broadcast %cst_15 : f32 to vector<16x128xf32>
    %25 = arith.mulf %24, %23 : vector<16x128xf32>
    %26 = arith.select %20, %18, %25 : vector<16x128xi1>, vector<16x128xf32>
    %c0_16 = arith.constant 0 : index
    %c0_17 = arith.constant 0 : index
    %27 = vector.load %arg6[%c0_16, %c0_17] : memref<128x128xf32, #tpu.memory_space<vmem>>, vector<128x128xf32>
    %cst_18 = arith.constant dense<0.000000e+00> : vector<16x128xf32>
    %28 = tpu.matmul %26, %27, %cst_18 {dimension_numbers = #tpu.dot_dimension_numbers<[1], [0], [0], [1], [0, 0, 1, 1], [], []>} : vector<16x128xf32>, vector<128x128xf32>, vector<16x128xf32> -> vector<16x128xf32>
    %c0_19 = arith.constant 0 : index
    %c0_20 = arith.constant 0 : index
    %29 = vector.load %arg7[%c0_19, %c0_20] : memref<1x128xf32, #tpu.memory_space<vmem>>, vector<1x128xf32>
    %30 = vector.broadcast %29 : vector<1x128xf32> to vector<16x128xf32>
    %31 = arith.addf %28, %30 : vector<16x128xf32>
    %cst_21 = arith.constant 0.000000e+00 : f32
    %32 = vector.broadcast %cst_21 : f32 to vector<16x128xf32>
    %33 = arith.cmpf ogt, %31, %32 : vector<16x128xf32>
    %34 = math.exp %31 : vector<16x128xf32>
    %cst_22 = arith.constant 1.000000e+00 : f32
    %35 = vector.broadcast %cst_22 : f32 to vector<16x128xf32>
    %36 = arith.subf %34, %35 : vector<16x128xf32>
    %cst_23 = arith.constant 1.67326319 : f32
    %37 = vector.broadcast %cst_23 : f32 to vector<16x128xf32>
    %38 = arith.mulf %37, %36 : vector<16x128xf32>
    %39 = arith.select %33, %31, %38 : vector<16x128xi1>, vector<16x128xf32>
    %c0_24 = arith.constant 0 : index
    %c0_25 = arith.constant 0 : index
    %40 = vector.load %arg8[%c0_24, %c0_25] : memref<128x128xf32, #tpu.memory_space<vmem>>, vector<128x128xf32>
    %cst_26 = arith.constant dense<0.000000e+00> : vector<16x128xf32>
    %41 = tpu.matmul %39, %40, %cst_26 {dimension_numbers = #tpu.dot_dimension_numbers<[1], [0], [0], [1], [0, 0, 1, 1], [], []>} : vector<16x128xf32>, vector<128x128xf32>, vector<16x128xf32> -> vector<16x128xf32>
    %c0_27 = arith.constant 0 : index
    %c0_28 = arith.constant 0 : index
    %42 = vector.load %arg9[%c0_27, %c0_28] : memref<1x128xf32, #tpu.memory_space<vmem>>, vector<1x128xf32>
    %43 = vector.broadcast %42 : vector<1x128xf32> to vector<16x128xf32>
    %44 = arith.addf %41, %43 : vector<16x128xf32>
    %c0_29 = arith.constant 0 : index
    %c0_30 = arith.constant 0 : index
    %45 = vector.load %arg10[%c0_29, %c0_30] : memref<16x128xf32, #tpu.memory_space<vmem>>, vector<16x128xf32>
    tpu.vector_store %arg10[%c0_29, %c0_30], %44 {strides = array<i32>} : memref<16x128xf32, #tpu.memory_space<vmem>>, vector<16x128xf32>,
    return
  }
  func.func @transform_0(%arg0: i32) -> (i32, i32) {
    %c0_i32 = arith.constant 0 : i32
    %c0_i32_0 = arith.constant 0 : i32
    return %arg0, %c0_i32 : i32, i32
  }
  func.func @transform_1(%arg0: i32) -> (i32, i32) {
    %c0_i32 = arith.constant 0 : i32
    %c0_i32_0 = arith.constant 0 : i32
    %c0_i32_1 = arith.constant 0 : i32
    return %c0_i32, %c0_i32_0 : i32, i32
  }
  func.func @transform_2(%arg0: i32) -> (i32, i32) {
    %c0_i32 = arith.constant 0 : i32
    %c0_i32_0 = arith.constant 0 : i32
    %c0_i32_1 = arith.constant 0 : i32
    return %c0_i32, %c0_i32_0 : i32, i32
  }
  func.func @transform_3(%arg0: i32) -> (i32, i32) {
    %c0_i32 = arith.constant 0 : i32
    %c0_i32_0 = arith.constant 0 : i32
    %c0_i32_1 = arith.constant 0 : i32
    return %c0_i32, %c0_i32_0 : i32, i32
  }
  func.func @transform_4(%arg0: i32) -> (i32, i32) {
    %c0_i32 = arith.constant 0 : i32
    %c0_i32_0 = arith.constant 0 : i32
    %c0_i32_1 = arith.constant 0 : i32
    return %c0_i32, %c0_i32_0 : i32, i32
  }
  func.func @transform_5(%arg0: i32) -> (i32, i32) {
    %c0_i32 = arith.constant 0 : i32
    %c0_i32_0 = arith.constant 0 : i32
    %c0_i32_1 = arith.constant 0 : i32
    return %c0_i32, %c0_i32_0 : i32, i32
  }
  func.func @transform_6(%arg0: i32) -> (i32, i32) {
    %c0_i32 = arith.constant 0 : i32
    %c0_i32_0 = arith.constant 0 : i32
    %c0_i32_1 = arith.constant 0 : i32
    return %c0_i32, %c0_i32_0 : i32, i32
  }
  func.func @transform_7(%arg0: i32) -> (i32, i32) {
    %c0_i32 = arith.constant 0 : i32
    %c0_i32_0 = arith.constant 0 : i32
    %c0_i32_1 = arith.constant 0 : i32
    return %c0_i32, %c0_i32_0 : i32, i32
  }
  func.func @transform_8(%arg0: i32) -> (i32, i32) {
    %c0_i32 = arith.constant 0 : i32
    %c0_i32_0 = arith.constant 0 : i32
    %c0_i32_1 = arith.constant 0 : i32
    return %c0_i32, %c0_i32_0 : i32, i32
  }
  func.func @transform_9(%arg0: i32) -> (i32, i32) {
    %c0_i32 = arith.constant 0 : i32
    %c0_i32_0 = arith.constant 0 : i32
    return %arg0, %c0_i32 : i32, i32
  }
}

</mosaic_0001>

<llo_original>
// kernel: _odefunc_core.1
$region0: #{_odefunc_core.1}
  #allocation0 [shape = 'u32[]', space=smem, size = 0x4, offset = 0x4, fixed_abs, tag = 'smem constant byte address 0x4 - core index']
  #allocation1 [shape = 'u32[144,128]{1,0:T(1,128)}', space=vmem, size = 0x12000, scoped, tag = 'internal scratch']
  %s0 = inlined_call_operand.hbm [shape: f32[16,128], index: 0, kind: input, shape index: {}]
  %s1 = inlined_call_operand.hbm [shape: f32[128,128], index: 1, kind: input, shape index: {}]
  %s2 = inlined_call_operand.vmem [shape: f32[1,128], index: 2, kind: input, shape index: {}]
  %s3 = inlined_call_operand.hbm [shape: f32[128,128], index: 3, kind: input, shape index: {}]
  %s4 = inlined_call_operand.vmem [shape: f32[1,128], index: 4, kind: input, shape index: {}]
  %s5 = inlined_call_operand.hbm [shape: f32[128,128], index: 5, kind: input, shape index: {}]
  %s6 = inlined_call_operand.vmem [shape: f32[1,128], index: 6, kind: input, shape index: {}]
  %s7 = inlined_call_operand.hbm [shape: f32[128,128], index: 7, kind: input, shape index: {}]
  %s8 = inlined_call_operand.vmem [shape: f32[1,128], index: 8, kind: input, shape index: {}]
  %s9 = inlined_call_operand.hbm [shape: f32[16,128], index: 9, kind: output, shape index: {}]
  %s10 = sld [smem:[#allocation0]]
  $region66: #{_odefunc_core.1} parent=0
    _
  %s12 = ssub.s32 1, %s10
  %s13 = scalar_select 0, %s12, %s10
  $region1: #{_odefunc_core.1} parent=0
    #allocation2 [shape = 'u8[8192]{0}', space=vmem, size = 0x2000, scoped, tag = 'input window, operand 0, single buffered']
    #allocation3 [shape = 's32[1]{0}', space=sflag, size = 0x4, scoped, tag = 'scoped memory for _odefunc_core.1']
    #allocation4 [shape = 's32[1]{0}', space=sflag, size = 0x4, scoped, tag = 'scoped memory for _odefunc_core.1']
    #allocation5 [shape = 'u8[65536]{0}', space=vmem, size = 0x10000, scoped, tag = 'input window, operand 1, single buffered']
    #allocation6 [shape = 's32[1]{0}', space=sflag, size = 0x4, scoped, tag = 'scoped memory for _odefunc_core.1']
    #allocation7 [shape = 'u8[65536]{0}', space=vmem, size = 0x10000, scoped, tag = 'input window, operand 3, single buffered']
    #allocation8 [shape = 'u8[65536]{0}', space=vmem, size = 0x10000, scoped, tag = 'input window, operand 5, single buffered']
    #allocation9 [shape = 's32[1]{0}', space=sflag, size = 0x4, scoped, tag = 'scoped memory for _odefunc_core.1']
    #allocation10 [shape = 'u8[65536]{0}', space=vmem, size = 0x10000, scoped, tag = 'input window, operand 7, single buffered']
    #allocation11 [shape = 'u8[8192]{0}', space=vmem, size = 0x2000, scoped, tag = 'output window, operand 0, single buffered']
    %14 = vsyncpa [#allocation3], 0
    %15 = vsyncpa [#allocation6], 0
    %16 = vsyncpa [#allocation9], 0
    %17 = vsyncpa [#allocation4], 0
    // Predicated region
    $region2: #{_odefunc_core.1} parent=1 // pred_check
      _
    $region3: #{_odefunc_core.1} parent=1 // pred_check_branch
      %19 = sbr.rel (0) target = $region5
    $region4: #{_odefunc_core.1} parent=1 // pred_region
      %s21 = ssub.s32 256, 256
      %22 = vsyncadd [#allocation3], %s21
      %s23 = sshll.u32 [#allocation2], 4
      %s24 = int_to_ptr.vmem [resolvable:$true] %s23
      %29 = dma.hbm_to_vmem [thread:$0]  %s0, 256, %s24, [#allocation3], 128, 128, 8
    $region5: #{_odefunc_core.1} parent=1 // pred_fallthru
      _
    // Predicated region
    $region6: #{_odefunc_core.1} parent=1 // pred_check
      _
    $region7: #{_odefunc_core.1} parent=1 // pred_check_branch
      %31 = sbr.rel (0) target = $region9
    $region8: #{_odefunc_core.1} parent=1 // pred_region
      %s33 = ssub.s32 2048, 2048
      %34 = vsyncadd [#allocation6], %s33
      %s35 = sshll.u32 [#allocation5], 4
      %s36 = int_to_ptr.vmem [resolvable:$true] %s35
      %41 = dma.hbm_to_vmem [thread:$0]  %s1, 2048, %s36, [#allocation6], 128, 128, 8
    $region9: #{_odefunc_core.1} parent=1 // pred_fallthru
      _
    // Predicated region
    $region10: #{_odefunc_core.1} parent=1 // pred_check
      _
    $region11: #{_odefunc_core.1} parent=1 // pred_check_branch
      %43 = sbr.rel (0) target = $region13
    $region12: #{_odefunc_core.1} parent=1 // pred_region
      _
    $region13: #{_odefunc_core.1} parent=1 // pred_fallthru
      _
    // Predicated region
    $region14: #{_odefunc_core.1} parent=1 // pred_check
      _
    $region15: #{_odefunc_core.1} parent=1 // pred_check_branch
      %45 = sbr.rel (0) target = $region17
    $region16: #{_odefunc_core.1} parent=1 // pred_region
      %s47 = ssub.s32 2048, 2048
      %48 = vsyncadd [#allocation6], %s47
      %s49 = sshll.u32 [#allocation7], 4
      %s50 = int_to_ptr.vmem [resolvable:$true] %s49
      %55 = dma.hbm_to_vmem [thread:$0]  %s3, 2048, %s50, [#allocation6], 128, 128, 8
    $region17: #{_odefunc_core.1} parent=1 // pred_fallthru
      _
    // Predicated region
    $region18: #{_odefunc_core.1} parent=1 // pred_check
      _
    $region19: #{_odefunc_core.1} parent=1 // pred_check_branch
      %57 = sbr.rel (0) target = $region21
    $region20: #{_odefunc_core.1} parent=1 // pred_region
      _
    $region21: #{_odefunc_core.1} parent=1 // pred_fallthru
      _
    // Predicated region
    $region22: #{_odefunc_core.1} parent=1 // pred_check
      _
    $region23: #{_odefunc_core.1} parent=1 // pred_check_branch
      %59 = sbr.rel (0) target = $region25
    $region24: #{_odefunc_core.1} parent=1 // pred_region
      %s61 = ssub.s32 2048, 2048
      %62 = vsyncadd [#allocation9], %s61
      %s63 = sshll.u32 [#allocation8], 4
      %s64 = int_to_ptr.vmem [resolvable:$true] %s63
      %69 = dma.hbm_to_vmem [thread:$0]  %s5, 2048, %s64, [#allocation9], 128, 128, 8
    $region25: #{_odefunc_core.1} parent=1 // pred_fallthru
      _
    // Predicated region
    $region26: #{_odefunc_core.1} parent=1 // pred_check
      _
    $region27: #{_odefunc_core.1} parent=1 // pred_check_branch
      %71 = sbr.rel (0) target = $region29
    $region28: #{_odefunc_core.1} parent=1 // pred_region
      _
    $region29: #{_odefunc_core.1} parent=1 // pred_fallthru
      _
    // Predicated region
    $region30: #{_odefunc_core.1} parent=1 // pred_check
      _
    $region31: #{_odefunc_core.1} parent=1 // pred_check_branch
      %73 = sbr.rel (0) target = $region33
    $region32: #{_odefunc_core.1} parent=1 // pred_region
      %s75 = ssub.s32 2048, 2048
      %76 = vsyncadd [#allocation9], %s75
      %s77 = sshll.u32 [#allocation10], 4
      %s78 = int_to_ptr.vmem [resolvable:$true] %s77
      %83 = dma.hbm_to_vmem [thread:$0]  %s7, 2048, %s78, [#allocation9], 128, 128, 8
    $region33: #{_odefunc_core.1} parent=1 // pred_fallthru
      _
    // Predicated region
    $region34: #{_odefunc_core.1} parent=1 // pred_check
      _
    $region35: #{_odefunc_core.1} parent=1 // pred_check_branch
      %85 = sbr.rel (0) target = $region37
    $region36: #{_odefunc_core.1} parent=1 // pred_region
      _
    $region37: #{_odefunc_core.1} parent=1 // pred_fallthru
      _
    // Predicated region
    $region38: #{_odefunc_core.1} parent=1 // pred_check
      _
    $region39: #{_odefunc_core.1} parent=1 // pred_check_branch
      %87 = sbr.rel (0) target = $region41
    $region40: #{_odefunc_core.1} parent=1 // pred_region
      %88 = dma.done [#allocation3], 256
    $region41: #{_odefunc_core.1} parent=1 // pred_fallthru
      _
    // Predicated region
    $region42: #{_odefunc_core.1} parent=1 // pred_check
      _
    $region43: #{_odefunc_core.1} parent=1 // pred_check_branch
      %90 = sbr.rel (0) target = $region45
    $region44: #{_odefunc_core.1} parent=1 // pred_region
      %91 = dma.done [#allocation6], 2048
    $region45: #{_odefunc_core.1} parent=1 // pred_fallthru
      _
    // Predicated region
    $region46: #{_odefunc_core.1} parent=1 // pred_check
      _
    $region47: #{_odefunc_core.1} parent=1 // pred_check_branch
      %93 = sbr.rel (0) target = $region49
    $region48: #{_odefunc_core.1} parent=1 // pred_region
      %94 = dma.done [#allocation6], 2048
    $region49: #{_odefunc_core.1} parent=1 // pred_fallthru
      _
    // Predicated region
    $region50: #{_odefunc_core.1} parent=1 // pred_check
      _
    $region51: #{_odefunc_core.1} parent=1 // pred_check_branch
      %96 = sbr.rel (0) target = $region53
    $region52: #{_odefunc_core.1} parent=1 // pred_region
      %97 = dma.done [#allocation9], 2048
    $region53: #{_odefunc_core.1} parent=1 // pred_fallthru
      _
    // Predicated region
    $region54: #{_odefunc_core.1} parent=1 // pred_check
      _
    $region55: #{_odefunc_core.1} parent=1 // pred_check_branch
      %99 = sbr.rel (0) target = $region57
    $region56: #{_odefunc_core.1} parent=1 // pred_region
      %100 = dma.done [#allocation9], 2048
    $region57: #{_odefunc_core.1} parent=1 // pred_fallthru
      _
    %v101 = vld [vmem:[#allocation2] sm:$0xff]
    %v102 = vld [vmem:[#allocation2 + $0x8] sm:$0xff]
    %v103 = vld [vmem:[#allocation5] sm:$0xff]
    %v104 = vld [vmem:[#allocation5 + $0x8] sm:$0xff]
    %v105 = vld [vmem:[#allocation5 + $0x10] sm:$0xff]
    %v106 = vld [vmem:[#allocation5 + $0x18] sm:$0xff]
    %v107 = vld [vmem:[#allocation5 + $0x20] sm:$0xff]
    %v108 = vld [vmem:[#allocation5 + $0x28] sm:$0xff]
    %v109 = vld [vmem:[#allocation5 + $0x30] sm:$0xff]
    %v110 = vld [vmem:[#allocation5 + $0x38] sm:$0xff]
    %v111 = vld [vmem:[#allocation5 + $0x40] sm:$0xff]
    %v112 = vld [vmem:[#allocation5 + $0x48] sm:$0xff]
    %v113 = vld [vmem:[#allocation5 + $0x50] sm:$0xff]
    %v114 = vld [vmem:[#allocation5 + $0x58] sm:$0xff]
    %v115 = vld [vmem:[#allocation5 + $0x60] sm:$0xff]
    %v116 = vld [vmem:[#allocation5 + $0x68] sm:$0xff]
    %v117 = vld [vmem:[#allocation5 + $0x70] sm:$0xff]
    %v118 = vld [vmem:[#allocation5 + $0x78] sm:$0xff]
    %v119 = vld [vmem:[%s2] sm:$0x1]
    %v121 = vlaneseq
    %v122 = vshrl.u32 %v121, 7
    %v123 = vsub.s32 0, %v122
    %v124 = vrot.slane %v119, %v123
    %126 = vmatprep.subr.mxu0 0.0
    %127 = vmatpush1.msra.mxu0 %v118
    %128 = vmatprep.subr.mxu0 0.0
    %129 = vmatpush1.msra.mxu0 %v117
    %130 = vmatprep.subr.mxu0 0.0
    %131 = vmatpush1.msra.mxu0 %v116
    %132 = vmatprep.subr.mxu0 0.0
    %133 = vmatpush1.msra.mxu0 %v115
    %134 = vmatprep.subr.mxu0 0.0
    %135 = vmatpush1.msra.mxu0 %v114
    %136 = vmatprep.subr.mxu0 0.0
    %137 = vmatpush1.msra.mxu0 %v113
    %138 = vmatprep.subr.mxu0 0.0
    %139 = vmatpush1.msra.mxu0 %v112
    %140 = vmatprep.subr.mxu0 0.0
    %141 = vmatpush1.msra.mxu0 %v111
    %142 = vmatprep.subr.mxu0 0.0
    %143 = vmatpush1.msra.mxu0 %v110
    %144 = vmatprep.subr.mxu0 0.0
    %145 = vmatpush1.msra.mxu0 %v109
    %146 = vmatprep.subr.mxu0 0.0
    %147 = vmatpush1.msra.mxu0 %v108
    %148 = vmatprep.subr.mxu0 0.0
    %149 = vmatpush1.msra.mxu0 %v107
    %150 = vmatprep.subr.mxu0 0.0
    %151 = vmatpush1.msra.mxu0 %v106
    %152 = vmatprep.subr.mxu0 0.0
    %153 = vmatpush1.msra.mxu0 %v105
    %154 = vmatprep.subr.mxu0 0.0
    %155 = vmatpush1.msra.mxu0 %v104
    %156 = vmatprep.subr.mxu0 0.0
    %157 = vmatpush1.msra.mxu0 %v103
    %158 = vmatprep.subr.mxu0 0.0
    %159 = vmatpush2.msra.mxu0 0.0
    %160 = vmatprep.subr.mxu0 0.0
    %161 = vmatpush2.msra.mxu0 0.0
    %162 = vmatprep.subr.mxu0 0.0
    %163 = vmatpush2.msra.mxu0 0.0
    %164 = vmatprep.subr.mxu0 0.0
    %165 = vmatpush2.msra.mxu0 0.0
    %166 = vmatprep.subr.mxu0 0.0
    %167 = vmatpush2.msra.mxu0 0.0
    %168 = vmatprep.subr.mxu0 0.0
    %169 = vmatpush2.msra.mxu0 0.0
    %170 = vmatprep.subr.mxu0 0.0
    %171 = vmatpush2.msra.mxu0 0.0
    %172 = vmatprep.subr.mxu0 0.0
    %173 = vmatpush2.msra.mxu0 0.0
    %174 = vmatprep.subr.mxu0 0.0
    %175 = vmatpush2.msra.mxu0 0.0
    %176 = vmatprep.subr.mxu0 0.0
    %177 = vmatpush2.msra.mxu0 0.0
    %178 = vmatprep.subr.mxu0 0.0
    %179 = vmatpush2.msra.mxu0 0.0
    %180 = vmatprep.subr.mxu0 0.0
    %181 = vmatpush2.msra.mxu0 0.0
    %182 = vmatprep.subr.mxu0 0.0
    %183 = vmatpush2.msra.mxu0 0.0
    %184 = vmatprep.subr.mxu0 0.0
    %185 = vmatpush2.msra.mxu0 0.0
    %186 = vmatprep.subr.mxu0 0.0
    %187 = vmatpush2.msra.mxu0 0.0
    %188 = vmatprep.subr.mxu0 0.0
    %189 = vmatpush2.msra.mxu0 0.0
    %190 = vmatprep.mubr.f32.mxu0 0.0
    %191 = vmatmul.mubr.f32.gmra.mxu0 %v101
    %v192 = vpop.f32.mrf.mxu0
    %v193 = vadd.f32 %v124, %v192
    %v194 = vpop.f32.mrf.mxu0
    %195 = vmatprep.mubr.f32.mxu0 0.0
    %196 = vmatmul.mubr.f32.gmra.mxu0 %v102
    %v197 = vpop.f32.mrf.mxu0
    %v198 = vadd.f32 %v124, %v197
    %v199 = vpop.f32.mrf.mxu0
    %200 = vdwg.mxu0
    %vm201 = vcmp.gt.f32.partialorder %v193, 0.0
    %vm202 = vcmp.gt.f32.partialorder %v198, 0.0
    %v203 = vmul.f32 %v193, 1.442695
    %v204 = vpow.pop %v203
    %v205 = vmul.f32 %v198, 1.442695
    %v206 = vpow.pop %v205
    %v207 = vsub.f32 %v204, 1.0
    %v208 = vsub.f32 %v206, 1.0
    %v209 = vmul.f32 %v207, 1.6732632
    %v210 = vmul.f32 %v208, 1.6732632
    %v211 = vsel %vm201, %v193, %v209
    %v212 = vsel %vm202, %v198, %v210
    %v213 = vld [vmem:[#allocation7] sm:$0xff]
    %v214 = vld [vmem:[#allocation7 + $0x8] sm:$0xff]
    %v215 = vld [vmem:[#allocation7 + $0x10] sm:$0xff]
    %v216 = vld [vmem:[#allocation7 + $0x18] sm:$0xff]
    %v217 = vld [vmem:[#allocation7 + $0x20] sm:$0xff]
    %v218 = vld [vmem:[#allocation7 + $0x28] sm:$0xff]
    %v219 = vld [vmem:[#allocation7 + $0x30] sm:$0xff]
    %v220 = vld [vmem:[#allocation7 + $0x38] sm:$0xff]
    %v221 = vld [vmem:[#allocation7 + $0x40] sm:$0xff]
    %v222 = vld [vmem:[#allocation7 + $0x48] sm:$0xff]
    %v223 = vld [vmem:[#allocation7 + $0x50] sm:$0xff]
    %v224 = vld [vmem:[#allocation7 + $0x58] sm:$0xff]
    %v225 = vld [vmem:[#allocation7 + $0x60] sm:$0xff]
    %v226 = vld [vmem:[#allocation7 + $0x68] sm:$0xff]
    %v227 = vld [vmem:[#allocation7 + $0x70] sm:$0xff]
    %v228 = vld [vmem:[#allocation7 + $0x78] sm:$0xff]
    %v229 = vld [vmem:[%s4] sm:$0x1]
    %v231 = vlaneseq
    %v232 = vshrl.u32 %v231, 7
    %v233 = vsub.s32 0, %v232
    %v234 = vrot.slane %v229, %v233
    %236 = vmatprep.subr.mxu0 0.0
    %237 = vmatpush1.msra.mxu0 %v228
    %238 = vmatprep.subr.mxu0 0.0
    %239 = vmatpush1.msra.mxu0 %v227
    %240 = vmatprep.subr.mxu0 0.0
    %241 = vmatpush1.msra.mxu0 %v226
    %242 = vmatprep.subr.mxu0 0.0
    %243 = vmatpush1.msra.mxu0 %v225
    %244 = vmatprep.subr.mxu0 0.0
    %245 = vmatpush1.msra.mxu0 %v224
    %246 = vmatprep.subr.mxu0 0.0
    %247 = vmatpush1.msra.mxu0 %v223
    %248 = vmatprep.subr.mxu0 0.0
    %249 = vmatpush1.msra.mxu0 %v222
    %250 = vmatprep.subr.mxu0 0.0
    %251 = vmatpush1.msra.mxu0 %v221
    %252 = vmatprep.subr.mxu0 0.0
    %253 = vmatpush1.msra.mxu0 %v220
    %254 = vmatprep.subr.mxu0 0.0
    %255 = vmatpush1.msra.mxu0 %v219
    %256 = vmatprep.subr.mxu0 0.0
    %257 = vmatpush1.msra.mxu0 %v218
    %258 = vmatprep.subr.mxu0 0.0
    %259 = vmatpush1.msra.mxu0 %v217
    %260 = vmatprep.subr.mxu0 0.0
    %261 = vmatpush1.msra.mxu0 %v216
    %262 = vmatprep.subr.mxu0 0.0
    %263 = vmatpush1.msra.mxu0 %v215
    %264 = vmatprep.subr.mxu0 0.0
    %265 = vmatpush1.msra.mxu0 %v214
    %266 = vmatprep.subr.mxu0 0.0
    %267 = vmatpush1.msra.mxu0 %v213
    %268 = vmatprep.subr.mxu0 0.0
    %269 = vmatpush2.msra.mxu0 0.0
    %270 = vmatprep.subr.mxu0 0.0
    %271 = vmatpush2.msra.mxu0 0.0
    %272 = vmatprep.subr.mxu0 0.0
    %273 = vmatpush2.msra.mxu0 0.0
    %274 = vmatprep.subr.mxu0 0.0
    %275 = vmatpush2.msra.mxu0 0.0
    %276 = vmatprep.subr.mxu0 0.0
    %277 = vmatpush2.msra.mxu0 0.0
    %278 = vmatprep.subr.mxu0 0.0
    %279 = vmatpush2.msra.mxu0 0.0
    %280 = vmatprep.subr.mxu0 0.0
    %281 = vmatpush2.msra.mxu0 0.0
    %282 = vmatprep.subr.mxu0 0.0
    %283 = vmatpush2.msra.mxu0 0.0
    %284 = vmatprep.subr.mxu0 0.0
    %285 = vmatpush2.msra.mxu0 0.0
    %286 = vmatprep.subr.mxu0 0.0
    %287 = vmatpush2.msra.mxu0 0.0
    %288 = vmatprep.subr.mxu0 0.0
    %289 = vmatpush2.msra.mxu0 0.0
    %290 = vmatprep.subr.mxu0 0.0
    %291 = vmatpush2.msra.mxu0 0.0
    %292 = vmatprep.subr.mxu0 0.0
    %293 = vmatpush2.msra.mxu0 0.0
    %294 = vmatprep.subr.mxu0 0.0
    %295 = vmatpush2.msra.mxu0 0.0
    %296 = vmatprep.subr.mxu0 0.0
    %297 = vmatpush2.msra.mxu0 0.0
    %298 = vmatprep.subr.mxu0 0.0
    %299 = vmatpush2.msra.mxu0 0.0
    %300 = vmatprep.mubr.f32.mxu0 0.0
    %301 = vmatmul.mubr.f32.gmra.mxu0 %v211
    %v302 = vpop.f32.mrf.mxu0
    %v303 = vadd.f32 %v234, %v302
    %v304 = vpop.f32.mrf.mxu0
    %305 = vmatprep.mubr.f32.mxu0 0.0
    %306 = vmatmul.mubr.f32.gmra.mxu0 %v212
    %v307 = vpop.f32.mrf.mxu0
    %v308 = vadd.f32 %v234, %v307
    %v309 = vpop.f32.mrf.mxu0
    %310 = vdwg.mxu0
    %vm311 = vcmp.gt.f32.partialorder %v303, 0.0
    %vm312 = vcmp.gt.f32.partialorder %v308, 0.0
    %v313 = vmul.f32 %v303, 1.442695
    %v314 = vpow.pop %v313
    %v315 = vmul.f32 %v308, 1.442695
    %v316 = vpow.pop %v315
    %v317 = vsub.f32 %v314, 1.0
    %v318 = vsub.f32 %v316, 1.0
    %v319 = vmul.f32 %v317, 1.6732632
    %v320 = vmul.f32 %v318, 1.6732632
    %v321 = vsel %vm311, %v303, %v319
    %v322 = vsel %vm312, %v308, %v320
    %v323 = vld [vmem:[#allocation8] sm:$0xff]
    %v324 = vld [vmem:[#allocation8 + $0x8] sm:$0xff]
    %v325 = vld [vmem:[#allocation8 + $0x10] sm:$0xff]
    %v326 = vld [vmem:[#allocation8 + $0x18] sm:$0xff]
    %v327 = vld [vmem:[#allocation8 + $0x20] sm:$0xff]
    %v328 = vld [vmem:[#allocation8 + $0x28] sm:$0xff]
    %v329 = vld [vmem:[#allocation8 + $0x30] sm:$0xff]
    %v330 = vld [vmem:[#allocation8 + $0x38] sm:$0xff]
    %v331 = vld [vmem:[#allocation8 + $0x40] sm:$0xff]
    %v332 = vld [vmem:[#allocation8 + $0x48] sm:$0xff]
    %v333 = vld [vmem:[#allocation8 + $0x50] sm:$0xff]
    %v334 = vld [vmem:[#allocation8 + $0x58] sm:$0xff]
    %v335 = vld [vmem:[#allocation8 + $0x60] sm:$0xff]
    %v336 = vld [vmem:[#allocation8 + $0x68] sm:$0xff]
    %v337 = vld [vmem:[#allocation8 + $0x70] sm:$0xff]
    %v338 = vld [vmem:[#allocation8 + $0x78] sm:$0xff]
    %v339 = vld [vmem:[%s6] sm:$0x1]
    %v341 = vlaneseq
    %v342 = vshrl.u32 %v341, 7
    %v343 = vsub.s32 0, %v342
    %v344 = vrot.slane %v339, %v343
    %346 = vmatprep.subr.mxu0 0.0
    %347 = vmatpush1.msra.mxu0 %v338
    %348 = vmatprep.subr.mxu0 0.0
    %349 = vmatpush1.msra.mxu0 %v337
    %350 = vmatprep.subr.mxu0 0.0
    %351 = vmatpush1.msra.mxu0 %v336
    %352 = vmatprep.subr.mxu0 0.0
    %353 = vmatpush1.msra.mxu0 %v335
    %354 = vmatprep.subr.mxu0 0.0
    %355 = vmatpush1.msra.mxu0 %v334
    %356 = vmatprep.subr.mxu0 0.0
    %357 = vmatpush1.msra.mxu0 %v333
    %358 = vmatprep.subr.mxu0 0.0
    %359 = vmatpush1.msra.mxu0 %v332
    %360 = vmatprep.subr.mxu0 0.0
    %361 = vmatpush1.msra.mxu0 %v331
    %362 = vmatprep.subr.mxu0 0.0
    %363 = vmatpush1.msra.mxu0 %v330
    %364 = vmatprep.subr.mxu0 0.0
    %365 = vmatpush1.msra.mxu0 %v329
    %366 = vmatprep.subr.mxu0 0.0
    %367 = vmatpush1.msra.mxu0 %v328
    %368 = vmatprep.subr.mxu0 0.0
    %369 = vmatpush1.msra.mxu0 %v327
    %370 = vmatprep.subr.mxu0 0.0
    %371 = vmatpush1.msra.mxu0 %v326
    %372 = vmatprep.subr.mxu0 0.0
    %373 = vmatpush1.msra.mxu0 %v325
    %374 = vmatprep.subr.mxu0 0.0
    %375 = vmatpush1.msra.mxu0 %v324
    %376 = vmatprep.subr.mxu0 0.0
    %377 = vmatpush1.msra.mxu0 %v323
    %378 = vmatprep.subr.mxu0 0.0
    %379 = vmatpush2.msra.mxu0 0.0
    %380 = vmatprep.subr.mxu0 0.0
    %381 = vmatpush2.msra.mxu0 0.0
    %382 = vmatprep.subr.mxu0 0.0
    %383 = vmatpush2.msra.mxu0 0.0
    %384 = vmatprep.subr.mxu0 0.0
    %385 = vmatpush2.msra.mxu0 0.0
    %386 = vmatprep.subr.mxu0 0.0
    %387 = vmatpush2.msra.mxu0 0.0
    %388 = vmatprep.subr.mxu0 0.0
    %389 = vmatpush2.msra.mxu0 0.0
    %390 = vmatprep.subr.mxu0 0.0
    %391 = vmatpush2.msra.mxu0 0.0
    %392 = vmatprep.subr.mxu0 0.0
    %393 = vmatpush2.msra.mxu0 0.0
    %394 = vmatprep.subr.mxu0 0.0
    %395 = vmatpush2.msra.mxu0 0.0
    %396 = vmatprep.subr.mxu0 0.0
    %397 = vmatpush2.msra.mxu0 0.0
    %398 = vmatprep.subr.mxu0 0.0
    %399 = vmatpush2.msra.mxu0 0.0
    %400 = vmatprep.subr.mxu0 0.0
    %401 = vmatpush2.msra.mxu0 0.0
    %402 = vmatprep.subr.mxu0 0.0
    %403 = vmatpush2.msra.mxu0 0.0
    %404 = vmatprep.subr.mxu0 0.0
    %405 = vmatpush2.msra.mxu0 0.0
    %406 = vmatprep.subr.mxu0 0.0
    %407 = vmatpush2.msra.mxu0 0.0
    %408 = vmatprep.subr.mxu0 0.0
    %409 = vmatpush2.msra.mxu0 0.0
    %410 = vmatprep.mubr.f32.mxu0 0.0
    %411 = vmatmul.mubr.f32.gmra.mxu0 %v321
    %v412 = vpop.f32.mrf.mxu0
    %v413 = vadd.f32 %v344, %v412
    %v414 = vpop.f32.mrf.mxu0
    %415 = vmatprep.mubr.f32.mxu0 0.0
    %416 = vmatmul.mubr.f32.gmra.mxu0 %v322
    %v417 = vpop.f32.mrf.mxu0
    %v418 = vadd.f32 %v344, %v417
    %v419 = vpop.f32.mrf.mxu0
    %420 = vdwg.mxu0
    %vm421 = vcmp.gt.f32.partialorder %v413, 0.0
    %vm422 = vcmp.gt.f32.partialorder %v418, 0.0
    %v423 = vmul.f32 %v413, 1.442695
    %v424 = vpow.pop %v423
    %v425 = vmul.f32 %v418, 1.442695
    %v426 = vpow.pop %v425
    %v427 = vsub.f32 %v424, 1.0
    %v428 = vsub.f32 %v426, 1.0
    %v429 = vmul.f32 %v427, 1.6732632
    %v430 = vmul.f32 %v428, 1.6732632
    %v431 = vsel %vm421, %v413, %v429
    %v432 = vsel %vm422, %v418, %v430
    %v433 = vld [vmem:[#allocation10] sm:$0xff]
    %v434 = vld [vmem:[#allocation10 + $0x8] sm:$0xff]
    %v435 = vld [vmem:[#allocation10 + $0x10] sm:$0xff]
    %v436 = vld [vmem:[#allocation10 + $0x18] sm:$0xff]
    %v437 = vld [vmem:[#allocation10 + $0x20] sm:$0xff]
    %v438 = vld [vmem:[#allocation10 + $0x28] sm:$0xff]
    %v439 = vld [vmem:[#allocation10 + $0x30] sm:$0xff]
    %v440 = vld [vmem:[#allocation10 + $0x38] sm:$0xff]
    %v441 = vld [vmem:[#allocation10 + $0x40] sm:$0xff]
    %v442 = vld [vmem:[#allocation10 + $0x48] sm:$0xff]
    %v443 = vld [vmem:[#allocation10 + $0x50] sm:$0xff]
    %v444 = vld [vmem:[#allocation10 + $0x58] sm:$0xff]
    %v445 = vld [vmem:[#allocation10 + $0x60] sm:$0xff]
    %v446 = vld [vmem:[#allocation10 + $0x68] sm:$0xff]
    %v447 = vld [vmem:[#allocation10 + $0x70] sm:$0xff]
    %v448 = vld [vmem:[#allocation10 + $0x78] sm:$0xff]
    %v449 = vld [vmem:[%s8] sm:$0x1]
    %v451 = vlaneseq
    %v452 = vshrl.u32 %v451, 7
    %v453 = vsub.s32 0, %v452
    %v454 = vrot.slane %v449, %v453
    %456 = vmatprep.subr.mxu0 0.0
    %457 = vmatpush1.msra.mxu0 %v448
    %458 = vmatprep.subr.mxu0 0.0
    %459 = vmatpush1.msra.mxu0 %v447
    %460 = vmatprep.subr.mxu0 0.0
    %461 = vmatpush1.msra.mxu0 %v446
    %462 = vmatprep.subr.mxu0 0.0
    %463 = vmatpush1.msra.mxu0 %v445
    %464 = vmatprep.subr.mxu0 0.0
    %465 = vmatpush1.msra.mxu0 %v444
    %466 = vmatprep.subr.mxu0 0.0
    %467 = vmatpush1.msra.mxu0 %v443
    %468 = vmatprep.subr.mxu0 0.0
    %469 = vmatpush1.msra.mxu0 %v442
    %470 = vmatprep.subr.mxu0 0.0
    %471 = vmatpush1.msra.mxu0 %v441
    %472 = vmatprep.subr.mxu0 0.0
    %473 = vmatpush1.msra.mxu0 %v440
    %474 = vmatprep.subr.mxu0 0.0
    %475 = vmatpush1.msra.mxu0 %v439
    %476 = vmatprep.subr.mxu0 0.0
    %477 = vmatpush1.msra.mxu0 %v438
    %478 = vmatprep.subr.mxu0 0.0
    %479 = vmatpush1.msra.mxu0 %v437
    %480 = vmatprep.subr.mxu0 0.0
    %481 = vmatpush1.msra.mxu0 %v436
    %482 = vmatprep.subr.mxu0 0.0
    %483 = vmatpush1.msra.mxu0 %v435
    %484 = vmatprep.subr.mxu0 0.0
    %485 = vmatpush1.msra.mxu0 %v434
    %486 = vmatprep.subr.mxu0 0.0
    %487 = vmatpush1.msra.mxu0 %v433
    %488 = vmatprep.subr.mxu0 0.0
    %489 = vmatpush2.msra.mxu0 0.0
    %490 = vmatprep.subr.mxu0 0.0
    %491 = vmatpush2.msra.mxu0 0.0
    %492 = vmatprep.subr.mxu0 0.0
    %493 = vmatpush2.msra.mxu0 0.0
    %494 = vmatprep.subr.mxu0 0.0
    %495 = vmatpush2.msra.mxu0 0.0
    %496 = vmatprep.subr.mxu0 0.0
    %497 = vmatpush2.msra.mxu0 0.0
    %498 = vmatprep.subr.mxu0 0.0
    %499 = vmatpush2.msra.mxu0 0.0
    %500 = vmatprep.subr.mxu0 0.0
    %501 = vmatpush2.msra.mxu0 0.0
    %502 = vmatprep.subr.mxu0 0.0
    %503 = vmatpush2.msra.mxu0 0.0
    %504 = vmatprep.subr.mxu0 0.0
    %505 = vmatpush2.msra.mxu0 0.0
    %506 = vmatprep.subr.mxu0 0.0
    %507 = vmatpush2.msra.mxu0 0.0
    %508 = vmatprep.subr.mxu0 0.0
    %509 = vmatpush2.msra.mxu0 0.0
    %510 = vmatprep.subr.mxu0 0.0
    %511 = vmatpush2.msra.mxu0 0.0
    %512 = vmatprep.subr.mxu0 0.0
    %513 = vmatpush2.msra.mxu0 0.0
    %514 = vmatprep.subr.mxu0 0.0
    %515 = vmatpush2.msra.mxu0 0.0
    %516 = vmatprep.subr.mxu0 0.0
    %517 = vmatpush2.msra.mxu0 0.0
    %518 = vmatprep.subr.mxu0 0.0
    %519 = vmatpush2.msra.mxu0 0.0
    %520 = vmatprep.mubr.f32.mxu0 0.0
    %521 = vmatmul.mubr.f32.gmra.mxu0 %v431
    %v522 = vpop.f32.mrf.mxu0
    %v523 = vadd.f32 %v454, %v522
    %v524 = vpop.f32.mrf.mxu0
    %525 = vmatprep.mubr.f32.mxu0 0.0
    %526 = vmatmul.mubr.f32.gmra.mxu0 %v432
    %v527 = vpop.f32.mrf.mxu0
    %v528 = vadd.f32 %v454, %v527
    %v529 = vpop.f32.mrf.mxu0
    %530 = vdwg.mxu0
    %531 = vst [vmem:[#allocation11] sm:$0xff] %v523
    %532 = vst [vmem:[#allocation11 + $0x8] sm:$0xff] %v528
    // Predicated region
    $region58: #{_odefunc_core.1} parent=1 // pred_check
      _
    $region59: #{_odefunc_core.1} parent=1 // pred_check_branch
      %534 = sbr.rel (0) target = $region61
    $region60: #{_odefunc_core.1} parent=1 // pred_region
      %s536 = ssub.s32 256, 256
      %537 = vsyncadd [#allocation4], %s536
      %s538 = sshll.u32 [#allocation11], 4
      %s539 = int_to_ptr.vmem [resolvable:$true] %s538
      %544 = dma.vmem_to_hbm [thread:$0]  %s539, 256, %s9, [#allocation4], 128, 128, 8
    $region61: #{_odefunc_core.1} parent=1 // pred_fallthru
      _
    // Predicated region
    $region62: #{_odefunc_core.1} parent=1 // pred_check
      _
    $region63: #{_odefunc_core.1} parent=1 // pred_check_branch
      %546 = sbr.rel (0) target = $region65
    $region64: #{_odefunc_core.1} parent=1 // pred_region
      %547 = dma.done [#allocation4], 256
    $region65: #{_odefunc_core.1} parent=1 // pred_fallthru
      _
    %548 = vsyncpa [#allocation3], 1
    %549 = vsyncpa [#allocation6], 1
    %550 = vsyncpa [#allocation9], 1
    %551 = vsyncpa [#allocation4], 1

// kernel: _odefunc_core.1
$region0: #{_odefunc_core.1}
  #allocation0 [shape = 'u32[]', space=smem, size = 0x4, offset = 0x4, fixed_abs, tag = 'smem constant byte address 0x4 - core index']
  #allocation1 [shape = 'u32[144,128]{1,0:T(1,128)}', space=vmem, size = 0x12000, scoped, tag = 'internal scratch']
  %s0 = inlined_call_operand.hbm [shape: f32[16,128], index: 0, kind: input, shape index: {}]
  %s1 = inlined_call_operand.hbm [shape: f32[128,128], index: 1, kind: input, shape index: {}]
  %s2 = inlined_call_operand.vmem [shape: f32[1,128], index: 2, kind: input, shape index: {}]
  %s3 = inlined_call_operand.hbm [shape: f32[128,128], index: 3, kind: input, shape index: {}]
  %s4 = inlined_call_operand.vmem [shape: f32[1,128], index: 4, kind: input, shape index: {}]
  %s5 = inlined_call_operand.hbm [shape: f32[128,128], index: 5, kind: input, shape index: {}]
  %s6 = inlined_call_operand.vmem [shape: f32[1,128], index: 6, kind: input, shape index: {}]
  %s7 = inlined_call_operand.hbm [shape: f32[128,128], index: 7, kind: input, shape index: {}]
  %s8 = inlined_call_operand.vmem [shape: f32[1,128], index: 8, kind: input, shape index: {}]
  %s9 = inlined_call_operand.hbm [shape: f32[16,128], index: 9, kind: output, shape index: {}]
  %s10 = sld [smem:[#allocation0]]
  $region66: #{_odefunc_core.1} parent=0
    _
  %s12 = ssub.s32 1, %s10
  %s13 = scalar_select 0, %s12, %s10
  $region1: #{_odefunc_core.1} parent=0
    #allocation2 [shape = 'u8[8192]{0}', space=vmem, size = 0x2000, scoped, tag = 'input window, operand 0, single buffered']
    #allocation3 [shape = 's32[1]{0}', space=sflag, size = 0x4, scoped, tag = 'scoped memory for _odefunc_core.1']
    #allocation4 [shape = 's32[1]{0}', space=sflag, size = 0x4, scoped, tag = 'scoped memory for _odefunc_core.1']
    #allocation5 [shape = 'u8[65536]{0}', space=vmem, size = 0x10000, scoped, tag = 'input window, operand 1, single buffered']
    #allocation6 [shape = 's32[1]{0}', space=sflag, size = 0x4, scoped, tag = 'scoped memory for _odefunc_core.1']
    #allocation7 [shape = 'u8[65536]{0}', space=vmem, size = 0x10000, scoped, tag = 'input window, operand 3, single buffered']
    #allocation8 [shape = 'u8[65536]{0}', space=vmem, size = 0x10000, scoped, tag = 'input window, operand 5, single buffered']
    #allocation9 [shape = 's32[1]{0}', space=sflag, size = 0x4, scoped, tag = 'scoped memory for _odefunc_core.1']
    #allocation10 [shape = 'u8[65536]{0}', space=vmem, size = 0x10000, scoped, tag = 'input window, operand 7, single buffered']
    #allocation11 [shape = 'u8[8192]{0}', space=vmem, size = 0x2000, scoped, tag = 'output window, operand 0, single buffered']
    %14 = vsyncpa [#allocation3], 0
    %15 = vsyncpa [#allocation6], 0
    %16 = vsyncpa [#allocation9], 0
    %17 = vsyncpa [#allocation4], 0
    // Predicated region
    $region2: #{_odefunc_core.1} parent=1 // pred_check
      _
    $region3: #{_odefunc_core.1} parent=1 // pred_check_branch
      %19 = sbr.rel (0) target = $region5
    $region4: #{_odefunc_core.1} parent=1 // pred_region
      %s21 = ssub.s32 256, 256
      %22 = vsyncadd [#allocation3], %s21
      %s23 = sshll.u32 [#allocation2], 4
      %s24 = int_to_ptr.vmem [resolvable:$true] %s23
      %29 = dma.hbm_to_vmem [thread:$0]  %s0, 256, %s24, [#allocation3], 128, 128, 8
    $region5: #{_odefunc_core.1} parent=1 // pred_fallthru
      _
    // Predicated region
    $region6: #{_odefunc_core.1} parent=1 // pred_check
      _
    $region7: #{_odefunc_core.1} parent=1 // pred_check_branch
      %31 = sbr.rel (0) target = $region9
    $region8: #{_odefunc_core.1} parent=1 // pred_region
      %s33 = ssub.s32 2048, 2048
      %34 = vsyncadd [#allocation6], %s33
      %s35 = sshll.u32 [#allocation5], 4
      %s36 = int_to_ptr.vmem [resolvable:$true] %s35
      %41 = dma.hbm_to_vmem [thread:$0]  %s1, 2048, %s36, [#allocation6], 128, 128, 8
    $region9: #{_odefunc_core.1} parent=1 // pred_fallthru
      _
    // Predicated region
    $region10: #{_odefunc_core.1} parent=1 // pred_check
      _
    $region11: #{_odefunc_core.1} parent=1 // pred_check_branch
      %43 = sbr.rel (0) target = $region13
    $region12: #{_odefunc_core.1} parent=1 // pred_region
      _
    $region13: #{_odefunc_core.1} parent=1 // pred_fallthru
      _
    // Predicated region
    $region14: #{_odefunc_core.1} parent=1 // pred_check
      _
    $region15: #{_odefunc_core.1} parent=1 // pred_check_branch
      %45 = sbr.rel (0) target = $region17
    $region16: #{_odefunc_core.1} parent=1 // pred_region
      %s47 = ssub.s32 2048, 2048
      %48 = vsyncadd [#allocation6], %s47
      %s49 = sshll.u32 [#allocation7], 4
      %s50 = int_to_ptr.vmem [resolvable:$true] %s49
      %55 = dma.hbm_to_vmem [thread:$0]  %s3, 2048, %s50, [#allocation6], 128, 128, 8
    $region17: #{_odefunc_core.1} parent=1 // pred_fallthru
      _
    // Predicated region
    $region18: #{_odefunc_core.1} parent=1 // pred_check
      _
    $region19: #{_odefunc_core.1} parent=1 // pred_check_branch
      %57 = sbr.rel (0) target = $region21
    $region20: #{_odefunc_core.1} parent=1 // pred_region
      _
    $region21: #{_odefunc_core.1} parent=1 // pred_fallthru
      _
    // Predicated region
    $region22: #{_odefunc_core.1} parent=1 // pred_check
      _
    $region23: #{_odefunc_core.1} parent=1 // pred_check_branch
      %59 = sbr.rel (0) target = $region25
    $region24: #{_odefunc_core.1} parent=1 // pred_region
      %s61 = ssub.s32 2048, 2048
      %62 = vsyncadd [#allocation9], %s61
      %s63 = sshll.u32 [#allocation8], 4
      %s64 = int_to_ptr.vmem [resolvable:$true] %s63
      %69 = dma.hbm_to_vmem [thread:$0]  %s5, 2048, %s64, [#allocation9], 128, 128, 8
    $region25: #{_odefunc_core.1} parent=1 // pred_fallthru
      _
    // Predicated region
    $region26: #{_odefunc_core.1} parent=1 // pred_check
      _
    $region27: #{_odefunc_core.1} parent=1 // pred_check_branch
      %71 = sbr.rel (0) target = $region29
    $region28: #{_odefunc_core.1} parent=1 // pred_region
      _
    $region29: #{_odefunc_core.1} parent=1 // pred_fallthru
      _
    // Predicated region
    $region30: #{_odefunc_core.1} parent=1 // pred_check
      _
    $region31: #{_odefunc_core.1} parent=1 // pred_check_branch
      %73 = sbr.rel (0) target = $region33
    $region32: #{_odefunc_core.1} parent=1 // pred_region
      %s75 = ssub.s32 2048, 2048
      %76 = vsyncadd [#allocation9], %s75
      %s77 = sshll.u32 [#allocation10], 4
      %s78 = int_to_ptr.vmem [resolvable:$true] %s77
      %83 = dma.hbm_to_vmem [thread:$0]  %s7, 2048, %s78, [#allocation9], 128, 128, 8
    $region33: #{_odefunc_core.1} parent=1 // pred_fallthru
      _
    // Predicated region
    $region34: #{_odefunc_core.1} parent=1 // pred_check
      _
    $region35: #{_odefunc_core.1} parent=1 // pred_check_branch
      %85 = sbr.rel (0) target = $region37
    $region36: #{_odefunc_core.1} parent=1 // pred_region
      _
    $region37: #{_odefunc_core.1} parent=1 // pred_fallthru
      _
    // Predicated region
    $region38: #{_odefunc_core.1} parent=1 // pred_check
      _
    $region39: #{_odefunc_core.1} parent=1 // pred_check_branch
      %87 = sbr.rel (0) target = $region41
    $region40: #{_odefunc_core.1} parent=1 // pred_region
      %88 = dma.done [#allocation3], 256
    $region41: #{_odefunc_core.1} parent=1 // pred_fallthru
      _
    // Predicated region
    $region42: #{_odefunc_core.1} parent=1 // pred_check
      _
    $region43: #{_odefunc_core.1} parent=1 // pred_check_branch
      %90 = sbr.rel (0) target = $region45
    $region44: #{_odefunc_core.1} parent=1 // pred_region
      %91 = dma.done [#allocation6], 2048
    $region45: #{_odefunc_core.1} parent=1 // pred_fallthru
      _
    // Predicated region
    $region46: #{_odefunc_core.1} parent=1 // pred_check
      _
    $region47: #{_odefunc_core.1} parent=1 // pred_check_branch
      %93 = sbr.rel (0) target = $region49
    $region48: #{_odefunc_core.1} parent=1 // pred_region
      %94 = dma.done [#allocation6], 2048
    $region49: #{_odefunc_core.1} parent=1 // pred_fallthru
      _
    // Predicated region
    $region50: #{_odefunc_core.1} parent=1 // pred_check
      _
    $region51: #{_odefunc_core.1} parent=1 // pred_check_branch
      %96 = sbr.rel (0) target = $region53
    $region52: #{_odefunc_core.1} parent=1 // pred_region
      %97 = dma.done [#allocation9], 2048
    $region53: #{_odefunc_core.1} parent=1 // pred_fallthru
      _
    // Predicated region
    $region54: #{_odefunc_core.1} parent=1 // pred_check
      _
    $region55: #{_odefunc_core.1} parent=1 // pred_check_branch
      %99 = sbr.rel (0) target = $region57
    $region56: #{_odefunc_core.1} parent=1 // pred_region
      %100 = dma.done [#allocation9], 2048
    $region57: #{_odefunc_core.1} parent=1 // pred_fallthru
      _
    %v101 = vld [vmem:[#allocation2] sm:$0xff]
    %v102 = vld [vmem:[#allocation2 + $0x8] sm:$0xff]
    %v103 = vld [vmem:[#allocation5] sm:$0xff]
    %v104 = vld [vmem:[#allocation5 + $0x8] sm:$0xff]
    %v105 = vld [vmem:[#allocation5 + $0x10] sm:$0xff]
    %v106 = vld [vmem:[#allocation5 + $0x18] sm:$0xff]
    %v107 = vld [vmem:[#allocation5 + $0x20] sm:$0xff]
    %v108 = vld [vmem:[#allocation5 + $0x28] sm:$0xff]
    %v109 = vld [vmem:[#allocation5 + $0x30] sm:$0xff]
    %v110 = vld [vmem:[#allocation5 + $0x38] sm:$0xff]
    %v111 = vld [vmem:[#allocation5 + $0x40] sm:$0xff]
    %v112 = vld [vmem:[#allocation5 + $0x48] sm:$0xff]
    %v113 = vld [vmem:[#allocation5 + $0x50] sm:$0xff]
    %v114 = vld [vmem:[#allocation5 + $0x58] sm:$0xff]
    %v115 = vld [vmem:[#allocation5 + $0x60] sm:$0xff]
    %v116 = vld [vmem:[#allocation5 + $0x68] sm:$0xff]
    %v117 = vld [vmem:[#allocation5 + $0x70] sm:$0xff]
    %v118 = vld [vmem:[#allocation5 + $0x78] sm:$0xff]
    %v119 = vld [vmem:[%s2] sm:$0x1]
    %v121 = vlaneseq
    %v122 = vshrl.u32 %v121, 7
    %v123 = vsub.s32 0, %v122
    %v124 = vrot.slane %v119, %v123
    %126 = vmatprep.subr.mxu0 0.0
    %127 = vmatpush1.msra.mxu0 %v118
    %128 = vmatprep.subr.mxu0 0.0
    %129 = vmatpush1.msra.mxu0 %v117
    %130 = vmatprep.subr.mxu0 0.0
    %131 = vmatpush1.msra.mxu0 %v116
    %132 = vmatprep.subr.mxu0 0.0
    %133 = vmatpush1.msra.mxu0 %v115
    %134 = vmatprep.subr.mxu0 0.0
    %135 = vmatpush1.msra.mxu0 %v114
    %136 = vmatprep.subr.mxu0 0.0
    %137 = vmatpush1.msra.mxu0 %v113
    %138 = vmatprep.subr.mxu0 0.0
    %139 = vmatpush1.msra.mxu0 %v112
    %140 = vmatprep.subr.mxu0 0.0
    %141 = vmatpush1.msra.mxu0 %v111
    %142 = vmatprep.subr.mxu0 0.0
    %143 = vmatpush1.msra.mxu0 %v110
    %144 = vmatprep.subr.mxu0 0.0
    %145 = vmatpush1.msra.mxu0 %v109
    %146 = vmatprep.subr.mxu0 0.0
    %147 = vmatpush1.msra.mxu0 %v108
    %148 = vmatprep.subr.mxu0 0.0
    %149 = vmatpush1.msra.mxu0 %v107
    %150 = vmatprep.subr.mxu0 0.0
    %151 = vmatpush1.msra.mxu0 %v106
    %152 = vmatprep.subr.mxu0 0.0
    %153 = vmatpush1.msra.mxu0 %v105
    %154 = vmatprep.subr.mxu0 0.0
    %155 = vmatpush1.msra.mxu0 %v104
    %156 = vmatprep.subr.mxu0 0.0
    %157 = vmatpush1.msra.mxu0 %v103
    %158 = vmatprep.subr.mxu0 0.0
    %159 = vmatpush2.msra.mxu0 0.0
    %160 = vmatprep.subr.mxu0 0.0
    %161 = vmatpush2.msra.mxu0 0.0
    %162 = vmatprep.subr.mxu0 0.0
    %163 = vmatpush2.msra.mxu0 0.0
    %164 = vmatprep.subr.mxu0 0.0
    %165 = vmatpush2.msra.mxu0 0.0
    %166 = vmatprep.subr.mxu0 0.0
    %167 = vmatpush2.msra.mxu0 0.0
    %168 = vmatprep.subr.mxu0 0.0
    %169 = vmatpush2.msra.mxu0 0.0
    %170 = vmatprep.subr.mxu0 0.0
    %171 = vmatpush2.msra.mxu0 0.0
    %172 = vmatprep.subr.mxu0 0.0
    %173 = vmatpush2.msra.mxu0 0.0
    %174 = vmatprep.subr.mxu0 0.0
    %175 = vmatpush2.msra.mxu0 0.0
    %176 = vmatprep.subr.mxu0 0.0
    %177 = vmatpush2.msra.mxu0 0.0
    %178 = vmatprep.subr.mxu0 0.0
    %179 = vmatpush2.msra.mxu0 0.0
    %180 = vmatprep.subr.mxu0 0.0
    %181 = vmatpush2.msra.mxu0 0.0
    %182 = vmatprep.subr.mxu0 0.0
    %183 = vmatpush2.msra.mxu0 0.0
    %184 = vmatprep.subr.mxu0 0.0
    %185 = vmatpush2.msra.mxu0 0.0
    %186 = vmatprep.subr.mxu0 0.0
    %187 = vmatpush2.msra.mxu0 0.0
    %188 = vmatprep.subr.mxu0 0.0
    %189 = vmatpush2.msra.mxu0 0.0
    %190 = vmatprep.mubr.f32.mxu0 0.0
    %191 = vmatmul.mubr.f32.gmra.mxu0 %v101
    %v192 = vpop.f32.mrf.mxu0
    %v193 = vadd.f32 %v124, %v192
    %v194 = vpop.f32.mrf.mxu0
    %195 = vmatprep.mubr.f32.mxu0 0.0
    %196 = vmatmul.mubr.f32.gmra.mxu0 %v102
    %v197 = vpop.f32.mrf.mxu0
    %v198 = vadd.f32 %v124, %v197
    %v199 = vpop.f32.mrf.mxu0
    %200 = vdwg.mxu0
    %vm201 = vcmp.gt.f32.partialorder %v193, 0.0
    %vm202 = vcmp.gt.f32.partialorder %v198, 0.0
    %v203 = vmul.f32 %v193, 1.442695
    %v204 = vpow.pop %v203
    %v205 = vmul.f32 %v198, 1.442695
    %v206 = vpow.pop %v205
    %v207 = vsub.f32 %v204, 1.0
    %v208 = vsub.f32 %v206, 1.0
    %v209 = vmul.f32 %v207, 1.6732632
    %v210 = vmul.f32 %v208, 1.6732632
    %v211 = vsel %vm201, %v193, %v209
    %v212 = vsel %vm202, %v198, %v210
    %v213 = vld [vmem:[#allocation7] sm:$0xff]
    %v214 = vld [vmem:[#allocation7 + $0x8] sm:$0xff]
    %v215 = vld [vmem:[#allocation7 + $0x10] sm:$0xff]
    %v216 = vld [vmem:[#allocation7 + $0x18] sm:$0xff]
    %v217 = vld [vmem:[#allocation7 + $0x20] sm:$0xff]
    %v218 = vld [vmem:[#allocation7 + $0x28] sm:$0xff]
    %v219 = vld [vmem:[#allocation7 + $0x30] sm:$0xff]
    %v220 = vld [vmem:[#allocation7 + $0x38] sm:$0xff]
    %v221 = vld [vmem:[#allocation7 + $0x40] sm:$0xff]
    %v222 = vld [vmem:[#allocation7 + $0x48] sm:$0xff]
    %v223 = vld [vmem:[#allocation7 + $0x50] sm:$0xff]
    %v224 = vld [vmem:[#allocation7 + $0x58] sm:$0xff]
    %v225 = vld [vmem:[#allocation7 + $0x60] sm:$0xff]
    %v226 = vld [vmem:[#allocation7 + $0x68] sm:$0xff]
    %v227 = vld [vmem:[#allocation7 + $0x70] sm:$0xff]
    %v228 = vld [vmem:[#allocation7 + $0x78] sm:$0xff]
    %v229 = vld [vmem:[%s4] sm:$0x1]
    %v231 = vlaneseq
    %v232 = vshrl.u32 %v231, 7
    %v233 = vsub.s32 0, %v232
    %v234 = vrot.slane %v229, %v233
    %236 = vmatprep.subr.mxu0 0.0
    %237 = vmatpush1.msra.mxu0 %v228
    %238 = vmatprep.subr.mxu0 0.0
    %239 = vmatpush1.msra.mxu0 %v227
    %240 = vmatprep.subr.mxu0 0.0
    %241 = vmatpush1.msra.mxu0 %v226
    %242 = vmatprep.subr.mxu0 0.0
    %243 = vmatpush1.msra.mxu0 %v225
    %244 = vmatprep.subr.mxu0 0.0
    %245 = vmatpush1.msra.mxu0 %v224
    %246 = vmatprep.subr.mxu0 0.0
    %247 = vmatpush1.msra.mxu0 %v223
    %248 = vmatprep.subr.mxu0 0.0
    %249 = vmatpush1.msra.mxu0 %v222
    %250 = vmatprep.subr.mxu0 0.0
    %251 = vmatpush1.msra.mxu0 %v221
    %252 = vmatprep.subr.mxu0 0.0
    %253 = vmatpush1.msra.mxu0 %v220
    %254 = vmatprep.subr.mxu0 0.0
    %255 = vmatpush1.msra.mxu0 %v219
    %256 = vmatprep.subr.mxu0 0.0
    %257 = vmatpush1.msra.mxu0 %v218
    %258 = vmatprep.subr.mxu0 0.0
    %259 = vmatpush1.msra.mxu0 %v217
    %260 = vmatprep.subr.mxu0 0.0
    %261 = vmatpush1.msra.mxu0 %v216
    %262 = vmatprep.subr.mxu0 0.0
    %263 = vmatpush1.msra.mxu0 %v215
    %264 = vmatprep.subr.mxu0 0.0
    %265 = vmatpush1.msra.mxu0 %v214
    %266 = vmatprep.subr.mxu0 0.0
    %267 = vmatpush1.msra.mxu0 %v213
    %268 = vmatprep.subr.mxu0 0.0
    %269 = vmatpush2.msra.mxu0 0.0
    %270 = vmatprep.subr.mxu0 0.0
    %271 = vmatpush2.msra.mxu0 0.0
    %272 = vmatprep.subr.mxu0 0.0
    %273 = vmatpush2.msra.mxu0 0.0
    %274 = vmatprep.subr.mxu0 0.0
    %275 = vmatpush2.msra.mxu0 0.0
    %276 = vmatprep.subr.mxu0 0.0
    %277 = vmatpush2.msra.mxu0 0.0
    %278 = vmatprep.subr.mxu0 0.0
    %279 = vmatpush2.msra.mxu0 0.0
    %280 = vmatprep.subr.mxu0 0.0
    %281 = vmatpush2.msra.mxu0 0.0
    %282 = vmatprep.subr.mxu0 0.0
    %283 = vmatpush2.msra.mxu0 0.0
    %284 = vmatprep.subr.mxu0 0.0
    %285 = vmatpush2.msra.mxu0 0.0
    %286 = vmatprep.subr.mxu0 0.0
    %287 = vmatpush2.msra.mxu0 0.0
    %288 = vmatprep.subr.mxu0 0.0
    %289 = vmatpush2.msra.mxu0 0.0
    %290 = vmatprep.subr.mxu0 0.0
    %291 = vmatpush2.msra.mxu0 0.0
    %292 = vmatprep.subr.mxu0 0.0
    %293 = vmatpush2.msra.mxu0 0.0
    %294 = vmatprep.subr.mxu0 0.0
    %295 = vmatpush2.msra.mxu0 0.0
    %296 = vmatprep.subr.mxu0 0.0
    %297 = vmatpush2.msra.mxu0 0.0
    %298 = vmatprep.subr.mxu0 0.0
    %299 = vmatpush2.msra.mxu0 0.0
    %300 = vmatprep.mubr.f32.mxu0 0.0
    %301 = vmatmul.mubr.f32.gmra.mxu0 %v211
    %v302 = vpop.f32.mrf.mxu0
    %v303 = vadd.f32 %v234, %v302
    %v304 = vpop.f32.mrf.mxu0
    %305 = vmatprep.mubr.f32.mxu0 0.0
    %306 = vmatmul.mubr.f32.gmra.mxu0 %v212
    %v307 = vpop.f32.mrf.mxu0
    %v308 = vadd.f32 %v234, %v307
    %v309 = vpop.f32.mrf.mxu0
    %310 = vdwg.mxu0
    %vm311 = vcmp.gt.f32.partialorder %v303, 0.0
    %vm312 = vcmp.gt.f32.partialorder %v308, 0.0
    %v313 = vmul.f32 %v303, 1.442695
    %v314 = vpow.pop %v313
    %v315 = vmul.f32 %v308, 1.442695
    %v316 = vpow.pop %v315
    %v317 = vsub.f32 %v314, 1.0
    %v318 = vsub.f32 %v316, 1.0
    %v319 = vmul.f32 %v317, 1.6732632
    %v320 = vmul.f32 %v318, 1.6732632
    %v321 = vsel %vm311, %v303, %v319
    %v322 = vsel %vm312, %v308, %v320
    %v323 = vld [vmem:[#allocation8] sm:$0xff]
    %v324 = vld [vmem:[#allocation8 + $0x8] sm:$0xff]
    %v325 = vld [vmem:[#allocation8 + $0x10] sm:$0xff]
    %v326 = vld [vmem:[#allocation8 + $0x18] sm:$0xff]
    %v327 = vld [vmem:[#allocation8 + $0x20] sm:$0xff]
    %v328 = vld [vmem:[#allocation8 + $0x28] sm:$0xff]
    %v329 = vld [vmem:[#allocation8 + $0x30] sm:$0xff]
    %v330 = vld [vmem:[#allocation8 + $0x38] sm:$0xff]
    %v331 = vld [vmem:[#allocation8 + $0x40] sm:$0xff]
    %v332 = vld [vmem:[#allocation8 + $0x48] sm:$0xff]
    %v333 = vld [vmem:[#allocation8 + $0x50] sm:$0xff]
    %v334 = vld [vmem:[#allocation8 + $0x58] sm:$0xff]
    %v335 = vld [vmem:[#allocation8 + $0x60] sm:$0xff]
    %v336 = vld [vmem:[#allocation8 + $0x68] sm:$0xff]
    %v337 = vld [vmem:[#allocation8 + $0x70] sm:$0xff]
    %v338 = vld [vmem:[#allocation8 + $0x78] sm:$0xff]
    %v339 = vld [vmem:[%s6] sm:$0x1]
    %v341 = vlaneseq
    %v342 = vshrl.u32 %v341, 7
    %v343 = vsub.s32 0, %v342
    %v344 = vrot.slane %v339, %v343
    %346 = vmatprep.subr.mxu0 0.0
    %347 = vmatpush1.msra.mxu0 %v338
    %348 = vmatprep.subr.mxu0 0.0
    %349 = vmatpush1.msra.mxu0 %v337
    %350 = vmatprep.subr.mxu0 0.0
    %351 = vmatpush1.msra.mxu0 %v336
    %352 = vmatprep.subr.mxu0 0.0
    %353 = vmatpush1.msra.mxu0 %v335
    %354 = vmatprep.subr.mxu0 0.0
    %355 = vmatpush1.msra.mxu0 %v334
    %356 = vmatprep.subr.mxu0 0.0
    %357 = vmatpush1.msra.mxu0 %v333
    %358 = vmatprep.subr.mxu0 0.0
    %359 = vmatpush1.msra.mxu0 %v332
    %360 = vmatprep.subr.mxu0 0.0
    %361 = vmatpush1.msra.mxu0 %v331
    %362 = vmatprep.subr.mxu0 0.0
    %363 = vmatpush1.msra.mxu0 %v330
    %364 = vmatprep.subr.mxu0 0.0
    %365 = vmatpush1.msra.mxu0 %v329
    %366 = vmatprep.subr.mxu0 0.0
    %367 = vmatpush1.msra.mxu0 %v328
    %368 = vmatprep.subr.mxu0 0.0
    %369 = vmatpush1.msra.mxu0 %v327
    %370 = vmatprep.subr.mxu0 0.0
    %371 = vmatpush1.msra.mxu0 %v326
    %372 = vmatprep.subr.mxu0 0.0
    %373 = vmatpush1.msra.mxu0 %v325
    %374 = vmatprep.subr.mxu0 0.0
    %375 = vmatpush1.msra.mxu0 %v324
    %376 = vmatprep.subr.mxu0 0.0
    %377 = vmatpush1.msra.mxu0 %v323
    %378 = vmatprep.subr.mxu0 0.0
    %379 = vmatpush2.msra.mxu0 0.0
    %380 = vmatprep.subr.mxu0 0.0
    %381 = vmatpush2.msra.mxu0 0.0
    %382 = vmatprep.subr.mxu0 0.0
    %383 = vmatpush2.msra.mxu0 0.0
    %384 = vmatprep.subr.mxu0 0.0
    %385 = vmatpush2.msra.mxu0 0.0
    %386 = vmatprep.subr.mxu0 0.0
    %387 = vmatpush2.msra.mxu0 0.0
    %388 = vmatprep.subr.mxu0 0.0
    %389 = vmatpush2.msra.mxu0 0.0
    %390 = vmatprep.subr.mxu0 0.0
    %391 = vmatpush2.msra.mxu0 0.0
    %392 = vmatprep.subr.mxu0 0.0
    %393 = vmatpush2.msra.mxu0 0.0
    %394 = vmatprep.subr.mxu0 0.0
    %395 = vmatpush2.msra.mxu0 0.0
    %396 = vmatprep.subr.mxu0 0.0
    %397 = vmatpush2.msra.mxu0 0.0
    %398 = vmatprep.subr.mxu0 0.0
    %399 = vmatpush2.msra.mxu0 0.0
    %400 = vmatprep.subr.mxu0 0.0
    %401 = vmatpush2.msra.mxu0 0.0
    %402 = vmatprep.subr.mxu0 0.0
    %403 = vmatpush2.msra.mxu0 0.0
    %404 = vmatprep.subr.mxu0 0.0
    %405 = vmatpush2.msra.mxu0 0.0
    %406 = vmatprep.subr.mxu0 0.0
    %407 = vmatpush2.msra.mxu0 0.0
    %408 = vmatprep.subr.mxu0 0.0
    %409 = vmatpush2.msra.mxu0 0.0
    %410 = vmatprep.mubr.f32.mxu0 0.0
    %411 = vmatmul.mubr.f32.gmra.mxu0 %v321
    %v412 = vpop.f32.mrf.mxu0
    %v413 = vadd.f32 %v344, %v412
    %v414 = vpop.f32.mrf.mxu0
    %415 = vmatprep.mubr.f32.mxu0 0.0
    %416 = vmatmul.mubr.f32.gmra.mxu0 %v322
    %v417 = vpop.f32.mrf.mxu0
    %v418 = vadd.f32 %v344, %v417
    %v419 = vpop.f32.mrf.mxu0
    %420 = vdwg.mxu0
    %vm421 = vcmp.gt.f32.partialorder %v413, 0.0
    %vm422 = vcmp.gt.f32.partialorder %v418, 0.0
    %v423 = vmul.f32 %v413, 1.442695
    %v424 = vpow.pop %v423
    %v425 = vmul.f32 %v418, 1.442695
    %v426 = vpow.pop %v425
    %v427 = vsub.f32 %v424, 1.0
    %v428 = vsub.f32 %v426, 1.0
    %v429 = vmul.f32 %v427, 1.6732632
    %v430 = vmul.f32 %v428, 1.6732632
    %v431 = vsel %vm421, %v413, %v429
    %v432 = vsel %vm422, %v418, %v430
    %v433 = vld [vmem:[#allocation10] sm:$0xff]
    %v434 = vld [vmem:[#allocation10 + $0x8] sm:$0xff]
    %v435 = vld [vmem:[#allocation10 + $0x10] sm:$0xff]
    %v436 = vld [vmem:[#allocation10 + $0x18] sm:$0xff]
    %v437 = vld [vmem:[#allocation10 + $0x20] sm:$0xff]
    %v438 = vld [vmem:[#allocation10 + $0x28] sm:$0xff]
    %v439 = vld [vmem:[#allocation10 + $0x30] sm:$0xff]
    %v440 = vld [vmem:[#allocation10 + $0x38] sm:$0xff]
    %v441 = vld [vmem:[#allocation10 + $0x40] sm:$0xff]
    %v442 = vld [vmem:[#allocation10 + $0x48] sm:$0xff]
    %v443 = vld [vmem:[#allocation10 + $0x50] sm:$0xff]
    %v444 = vld [vmem:[#allocation10 + $0x58] sm:$0xff]
    %v445 = vld [vmem:[#allocation10 + $0x60] sm:$0xff]
    %v446 = vld [vmem:[#allocation10 + $0x68] sm:$0xff]
    %v447 = vld [vmem:[#allocation10 + $0x70] sm:$0xff]
    %v448 = vld [vmem:[#allocation10 + $0x78] sm:$0xff]
    %v449 = vld [vmem:[%s8] sm:$0x1]
    %v451 = vlaneseq
    %v452 = vshrl.u32 %v451, 7
    %v453 = vsub.s32 0, %v452
    %v454 = vrot.slane %v449, %v453
    %456 = vmatprep.subr.mxu0 0.0
    %457 = vmatpush1.msra.mxu0 %v448
    %458 = vmatprep.subr.mxu0 0.0
    %459 = vmatpush1.msra.mxu0 %v447
    %460 = vmatprep.subr.mxu0 0.0
    %461 = vmatpush1.msra.mxu0 %v446
    %462 = vmatprep.subr.mxu0 0.0
    %463 = vmatpush1.msra.mxu0 %v445
    %464 = vmatprep.subr.mxu0 0.0
    %465 = vmatpush1.msra.mxu0 %v444
    %466 = vmatprep.subr.mxu0 0.0
    %467 = vmatpush1.msra.mxu0 %v443
    %468 = vmatprep.subr.mxu0 0.0
    %469 = vmatpush1.msra.mxu0 %v442
    %470 = vmatprep.subr.mxu0 0.0
    %471 = vmatpush1.msra.mxu0 %v441
    %472 = vmatprep.subr.mxu0 0.0
    %473 = vmatpush1.msra.mxu0 %v440
    %474 = vmatprep.subr.mxu0 0.0
    %475 = vmatpush1.msra.mxu0 %v439
    %476 = vmatprep.subr.mxu0 0.0
    %477 = vmatpush1.msra.mxu0 %v438
    %478 = vmatprep.subr.mxu0 0.0
    %479 = vmatpush1.msra.mxu0 %v437
    %480 = vmatprep.subr.mxu0 0.0
    %481 = vmatpush1.msra.mxu0 %v436
    %482 = vmatprep.subr.mxu0 0.0
    %483 = vmatpush1.msra.mxu0 %v435
    %484 = vmatprep.subr.mxu0 0.0
    %485 = vmatpush1.msra.mxu0 %v434
    %486 = vmatprep.subr.mxu0 0.0
    %487 = vmatpush1.msra.mxu0 %v433
    %488 = vmatprep.subr.mxu0 0.0
    %489 = vmatpush2.msra.mxu0 0.0
    %490 = vmatprep.subr.mxu0 0.0
    %491 = vmatpush2.msra.mxu0 0.0
    %492 = vmatprep.subr.mxu0 0.0
    %493 = vmatpush2.msra.mxu0 0.0
    %494 = vmatprep.subr.mxu0 0.0
    %495 = vmatpush2.msra.mxu0 0.0
    %496 = vmatprep.subr.mxu0 0.0
    %497 = vmatpush2.msra.mxu0 0.0
    %498 = vmatprep.subr.mxu0 0.0
    %499 = vmatpush2.msra.mxu0 0.0
    %500 = vmatprep.subr.mxu0 0.0
    %501 = vmatpush2.msra.mxu0 0.0
    %502 = vmatprep.subr.mxu0 0.0
    %503 = vmatpush2.msra.mxu0 0.0
    %504 = vmatprep.subr.mxu0 0.0
    %505 = vmatpush2.msra.mxu0 0.0
    %506 = vmatprep.subr.mxu0 0.0
    %507 = vmatpush2.msra.mxu0 0.0
    %508 = vmatprep.subr.mxu0 0.0
    %509 = vmatpush2.msra.mxu0 0.0
    %510 = vmatprep.subr.mxu0 0.0
    %511 = vmatpush2.msra.mxu0 0.0
    %512 = vmatprep.subr.mxu0 0.0
    %513 = vmatpush2.msra.mxu0 0.0
    %514 = vmatprep.subr.mxu0 0.0
    %515 = vmatpush2.msra.mxu0 0.0
    %516 = vmatprep.subr.mxu0 0.0
    %517 = vmatpush2.msra.mxu0 0.0
    %518 = vmatprep.subr.mxu0 0.0
    %519 = vmatpush2.msra.mxu0 0.0
    %520 = vmatprep.mubr.f32.mxu0 0.0
    %521 = vmatmul.mubr.f32.gmra.mxu0 %v431
    %v522 = vpop.f32.mrf.mxu0
    %v523 = vadd.f32 %v454, %v522
    %v524 = vpop.f32.mrf.mxu0
    %525 = vmatprep.mubr.f32.mxu0 0.0
    %526 = vmatmul.mubr.f32.gmra.mxu0 %v432
    %v527 = vpop.f32.mrf.mxu0
    %v528 = vadd.f32 %v454, %v527
    %v529 = vpop.f32.mrf.mxu0
    %530 = vdwg.mxu0
    %531 = vst [vmem:[#allocation11] sm:$0xff] %v523
    %532 = vst [vmem:[#allocation11 + $0x8] sm:$0xff] %v528
    // Predicated region
    $region58: #{_odefunc_core.1} parent=1 // pred_check
      _
    $region59: #{_odefunc_core.1} parent=1 // pred_check_branch
      %534 = sbr.rel (0) target = $region61
    $region60: #{_odefunc_core.1} parent=1 // pred_region
      %s536 = ssub.s32 256, 256
      %537 = vsyncadd [#allocation4], %s536
      %s538 = sshll.u32 [#allocation11], 4
      %s539 = int_to_ptr.vmem [resolvable:$true] %s538
      %544 = dma.vmem_to_hbm [thread:$0]  %s539, 256, %s9, [#allocation4], 128, 128, 8
    $region61: #{_odefunc_core.1} parent=1 // pred_fallthru
      _
    // Predicated region
    $region62: #{_odefunc_core.1} parent=1 // pred_check
      _
    $region63: #{_odefunc_core.1} parent=1 // pred_check_branch
      %546 = sbr.rel (0) target = $region65
    $region64: #{_odefunc_core.1} parent=1 // pred_region
      %547 = dma.done [#allocation4], 256
    $region65: #{_odefunc_core.1} parent=1 // pred_fallthru
      _
    %548 = vsyncpa [#allocation3], 1
    %549 = vsyncpa [#allocation6], 1
    %550 = vsyncpa [#allocation9], 1
    %551 = vsyncpa [#allocation4], 1

</llo_original>
